<compile_context>
chip_gen: v6e
topology: v6e:2x2x1
jax: 0.10.0
libtpu: 0.0.40
codegen_flags: <defaults>
</compile_context>

<pallas_src>
import functools
import math

import jax
import jax.numpy as jnp
from jax.experimental import pallas as pl
from jax.experimental.pallas import tpu as pltpu

_MXU_DTYPE = jnp.bfloat16   # MXU operand dtype; accumulation stays f32.
_LN_EPS = 1e-12             # BERT layernorm eps.


def _vmem_limit_bytes():
    """Raise the scoped VMEM limit with generation-aware headroom."""
    try:
        cap = pltpu.get_tpu_info().vmem_capacity_bytes
        return int(min(cap - (16 << 20), 100 << 20))   # ~48 MiB v7x, 100 MiB v5e/v6e
    except Exception:
        return 64 << 20


def _row_tile_target():
    """Row-tile target: 512 where VMEM is plentiful (v5e/v6e), 256 on v7x."""
    try:
        cap = pltpu.get_tpu_info().vmem_capacity_bytes
        return 256 if cap <= (64 << 20) else 512
    except Exception:
        return 256


_VMEM_LIMIT = _vmem_limit_bytes()
_ROW_TILE = _row_tile_target()


def _pick_tile(n, target=256):
    """Largest tile <= target that evenly divides n (keeps grids exact)."""
    for t in (1024, 512, 256, 128, 64, 32, 16, 8):
        if t <= target and t <= n and n % t == 0:
            return t
    return n


def _layernorm(y, g, b):
    y = y.astype(jnp.float32)
    mu = jnp.mean(y, axis=-1, keepdims=True)
    var = jnp.mean(jnp.square(y - mu), axis=-1, keepdims=True)
    return (y - mu) * jax.lax.rsqrt(var + _LN_EPS) * g + b


def _mm(x, w):
    # x: f32 activations (cast to bf16 for the MXU); w: pre-cast bf16 weights.
    return jnp.dot(x.astype(_MXU_DTYPE), w, preferred_element_type=jnp.float32)


# ---------------------------------------------------------------------------
# Pallas kernels
# ---------------------------------------------------------------------------
def _embed_ln_kernel(w_ref, p_ref, t_ref, g_ref, b_ref, o_ref):
    # w_ref: [1, S, H] gathered word embeddings; p_ref: [S, H] positions;
    # t_ref: [1, H] token-type row.  Adds + LayerNorm fused in VMEM.
    y = w_ref[0] + p_ref[...] + t_ref[...]
    o_ref[0] = _layernorm(y, g_ref[...], b_ref[...]).astype(o_ref.dtype)


def _attn_block_kernel(x_ref, wqkv_ref, bqkv_ref, wo_ref, bo_ref, g_ref, bln_ref,
                       o_ref, *, n_heads, scale):
    # x_ref block: [1, S, H]; wqkv: [H, 3H] bf16; wo: [H, H] bf16.
    x = x_ref[0]                                            # [S, H] f32
    H = x.shape[-1]
    dh = H // n_heads

    # One full-width fused QKV projection (full MXU occupancy vs per-head dh).
    qkv = _mm(x, wqkv_ref[...]) + bqkv_ref[...]             # [S, 3H] f32

    # TODO(synk): at real head counts (12) replace this unrolled loop with a
    # lax.fori_loop / batched einsum to bound vreg live ranges, and add a
    # query-tile grid axis for v7x's 2 TensorCores.
    ctx_heads = []
    for hd in range(n_heads):
        # 1/sqrt(dh) folded into q; score & PV matmuls use bf16 operands.
        q = (qkv[:, hd * dh:(hd + 1) * dh] * scale).astype(_MXU_DTYPE)
        k = qkv[:, H + hd * dh:H + (hd + 1) * dh].astype(_MXU_DTYPE)
        v = qkv[:, 2 * H + hd * dh:2 * H + (hd + 1) * dh].astype(_MXU_DTYPE)
        s = jax.lax.dot_general(q, k, (((1,), (1,)), ((), ())),
                                preferred_element_type=jnp.float32)   # [S, S]
        s = s - jnp.max(s, axis=-1, keepdims=True)
        p = jnp.exp(s)
        inv = pl.reciprocal(jnp.sum(p, axis=-1, keepdims=True), approx=True)
        ctx = jnp.dot(p.astype(_MXU_DTYPE), v,
                      preferred_element_type=jnp.float32)             # [S, dh]
        ctx_heads.append(ctx * inv)   # denominator applied to [S,dh], not [S,S]

    ctx_full = jnp.concatenate(ctx_heads, axis=-1)          # [S, H] f32
    attn = _mm(ctx_full, wo_ref[...]) + bo_ref[...] + x     # out-proj + residual
    o_ref[0] = _layernorm(attn, g_ref[...], bln_ref[...]).astype(o_ref.dtype)


def _ffn_block_kernel(x_ref, w1_ref, b1_ref, w2_ref, b2_ref, g_ref, bln_ref, o_ref):
    x = x_ref[...]                                          # [tm, H] f32
    h = _mm(x, w1_ref[...]) + b1_ref[...]
    # TODO(synk): HF BERT uses exact erf-GELU; tanh approximation used here.
    h = jax.nn.gelu(h, approximate=True)
    y = _mm(h, w2_ref[...]) + b2_ref[...] + x               # residual
    o_ref[...] = _layernorm(y, g_ref[...], bln_ref[...]).astype(o_ref.dtype)


def _dense_gelu_ln_kernel(x_ref, w_ref, b_ref, g_ref, bln_ref, o_ref):
    y = _mm(x_ref[...], w_ref[...]) + b_ref[...]
    # TODO(synk): HF BERT uses exact erf-GELU; tanh approximation used here.
    y = jax.nn.gelu(y, approximate=True)
    o_ref[...] = _layernorm(y, g_ref[...], bln_ref[...]).astype(o_ref.dtype)


def _decoder_softmax_kernel(x_ref, e_ref, b_ref, o_ref):
    # logits = x @ emb.T against the UNtransposed bf16 table; fused softmax.
    z = jax.lax.dot_general(
        x_ref[...].astype(_MXU_DTYPE), e_ref[...],
        dimension_numbers=(((1,), (1,)), ((), ())),
        preferred_element_type=jnp.float32) + b_ref[...]
    z = z - jnp.max(z, axis=-1, keepdims=True)
    p = jnp.exp(z)
    o_ref[...] = (p / jnp.sum(p, axis=-1, keepdims=True)).astype(o_ref.dtype)


# ---------------------------------------------------------------------------
# pallas_call wrappers
# ---------------------------------------------------------------------------
def pallas_embed_layernorm(word, pos, typ, g, b):
    B, S, H = word.shape
    return pl.pallas_call(
        _embed_ln_kernel,
        out_shape=jax.ShapeDtypeStruct((B, S, H), jnp.float32),
        grid=(B,),
        in_specs=[pl.BlockSpec((1, S, H), lambda i: (i, 0, 0)),
                  pl.BlockSpec((S, H), lambda i: (0, 0)),
                  pl.BlockSpec((1, H), lambda i: (0, 0)),
                  pl.BlockSpec((1, H), lambda i: (0, 0)),
                  pl.BlockSpec((1, H), lambda i: (0, 0))],
        out_specs=pl.BlockSpec((1, S, H), lambda i: (i, 0, 0)),
        input_output_aliases={0: 0},
        compiler_params=pltpu.CompilerParams(
            dimension_semantics=("parallel",), vmem_limit_bytes=_VMEM_LIMIT),
    )(word, pos, typ.reshape(1, H), g.reshape(1, H), b.reshape(1, H))


def pallas_attention_block(x, lyr, *, n_heads):
    B, S, H = x.shape
    dh = H // n_heads
    kern = functools.partial(_attn_block_kernel, n_heads=n_heads,
                             scale=1.0 / math.sqrt(dh))
    const3 = lambda b: (0, 0)
    return pl.pallas_call(
        kern,
        out_shape=jax.ShapeDtypeStruct((B, S, H), x.dtype),
        grid=(B,),
        in_specs=[
            pl.BlockSpec((1, S, H), lambda b: (b, 0, 0)),    # x / residual
            pl.BlockSpec((H, 3 * H), const3),                # wqkv (bf16)
            pl.BlockSpec((1, 3 * H), const3),                # bqkv
            pl.BlockSpec((H, H), const3),                    # wo (bf16)
            pl.BlockSpec((1, H), const3),                    # bo
            pl.BlockSpec((1, H), const3),                    # ln1_g
            pl.BlockSpec((1, H), const3),                    # ln1_b
        ],
        out_specs=pl.BlockSpec((1, S, H), lambda b: (b, 0, 0)),
        input_output_aliases={0: 0},
        compiler_params=pltpu.CompilerParams(
            dimension_semantics=("parallel",), vmem_limit_bytes=_VMEM_LIMIT),
    )(x, lyr["wqkv"], lyr["bqkv"].reshape(1, 3 * H), lyr["wo"],
      lyr["bo"].reshape(1, H), lyr["ln1_g"].reshape(1, H),
      lyr["ln1_b"].reshape(1, H))


def pallas_ffn_block(x, lyr):
    M, H = x.shape
    F = lyr["w_ff1"].shape[1]
    tm = _pick_tile(M, target=_ROW_TILE)
    const = lambda i: (0, 0)
    # TODO(synk): on v7x, pipeline_mode=pl.Buffered(1) on the constant-index
    # weight specs would halve their VMEM residency.
    return pl.pallas_call(
        _ffn_block_kernel,
        out_shape=jax.ShapeDtypeStruct((M, H), x.dtype),
        grid=(M // tm,),
        in_specs=[pl.BlockSpec((tm, H), lambda i: (i, 0)),
                  pl.BlockSpec((H, F), const),               # w_ff1 (bf16)
                  pl.BlockSpec((1, F), const),
                  pl.BlockSpec((F, H), const),               # w_ff2 (bf16)
                  pl.BlockSpec((1, H), const),
                  pl.BlockSpec((1, H), const),
                  pl.BlockSpec((1, H), const)],
        out_specs=pl.BlockSpec((tm, H), lambda i: (i, 0)),
        input_output_aliases={0: 0},
        compiler_params=pltpu.CompilerParams(
            dimension_semantics=("parallel",), vmem_limit_bytes=_VMEM_LIMIT),
    )(x, lyr["w_ff1"], lyr["b_ff1"].reshape(1, F), lyr["w_ff2"],
      lyr["b_ff2"].reshape(1, H), lyr["ln2_g"].reshape(1, H),
      lyr["ln2_b"].reshape(1, H))


def pallas_mlm_transform(x, w, b, g, bln):
    M, H = x.shape
    tm = _pick_tile(M, target=_ROW_TILE)
    const = lambda i: (0, 0)
    return pl.pallas_call(
        _dense_gelu_ln_kernel,
        out_shape=jax.ShapeDtypeStruct((M, H), x.dtype),
        grid=(M // tm,),
        in_specs=[pl.BlockSpec((tm, H), lambda i: (i, 0)),
                  pl.BlockSpec((H, H), const),               # mlm_w (bf16)
                  pl.BlockSpec((1, H), const),
                  pl.BlockSpec((1, H), const),
                  pl.BlockSpec((1, H), const)],
        out_specs=pl.BlockSpec((tm, H), lambda i: (i, 0)),
        input_output_aliases={0: 0},
        compiler_params=pltpu.CompilerParams(
            dimension_semantics=("parallel",), vmem_limit_bytes=_VMEM_LIMIT),
    )(x, w, b.reshape(1, H), g.reshape(1, H), bln.reshape(1, H))


def pallas_decoder_softmax(x, emb_bf16, bias):
    M, H = x.shape
    V = emb_bf16.shape[0]
    tm = _pick_tile(M, target=128)
    # bf16 embedding table kept VMEM-resident (constant index_map, no K axis):
    # the table is DMA'd from HBM once per call instead of once per row tile.
    # TODO(synk): on v7x (64 MiB VMEM) at real vocab (~30k) switch to a
    # vocab-tiled online softmax with bf16 output.
    return pl.pallas_call(
        _decoder_softmax_kernel,
        out_shape=jax.ShapeDtypeStruct((M, V), x.dtype),
        grid=(M // tm,),
        in_specs=[pl.BlockSpec((tm, H), lambda i: (i, 0)),
                  pl.BlockSpec((V, H), lambda i: (0, 0)),    # untransposed bf16 table
                  pl.BlockSpec((1, V), lambda i: (0, 0))],
        out_specs=pl.BlockSpec((tm, V), lambda i: (i, 0)),
        compiler_params=pltpu.CompilerParams(
            dimension_semantics=("parallel",), vmem_limit_bytes=_VMEM_LIMIT),
    )(x, emb_bf16, bias.reshape(1, V))


# ---------------------------------------------------------------------------
# Synthetic BERT parameters (deterministic); matmul weights pre-cast to bf16.
# ---------------------------------------------------------------------------
def init_params(key, *, vocab_size, hidden, n_layers, n_heads, ffn, max_pos):
    del n_heads  # head split happens inside the attention kernel

    def normal(k, shape, dtype=jnp.float32):
        return (0.02 * jax.random.normal(k, shape)).astype(dtype)

    # Generous key count (avoids StopIteration regardless of layout changes).
    keys = iter(jax.random.split(key, 8 + 8 * n_layers))

    word_emb = normal(next(keys), (vocab_size, hidden))
    params = {
        "word_emb": word_emb,                                   # f32: embedding gather
        "word_emb_bf16": word_emb.astype(_MXU_DTYPE),           # bf16: tied decoder matmul
        "pos_emb": normal(next(keys), (max_pos, hidden)),
        "type_emb": normal(next(keys), (2, hidden)),
        "emb_ln_g": jnp.ones((hidden,), jnp.float32),
        "emb_ln_b": jnp.zeros((hidden,), jnp.float32),
        "mlm_w": normal(next(keys), (hidden, hidden), _MXU_DTYPE),
        "mlm_b": jnp.zeros((hidden,), jnp.float32),
        "mlm_ln_g": jnp.ones((hidden,), jnp.float32),
        "mlm_ln_b": jnp.zeros((hidden,), jnp.float32),
        "decoder_b": jnp.zeros((vocab_size,), jnp.float32),
        "layers": [],
    }
    for _ in range(n_layers):
        lyr = {
            # Fused QKV weight [H, 3H] (bf16) -> single full-width projection.
            "wqkv": normal(next(keys), (hidden, 3 * hidden), _MXU_DTYPE),
            "bqkv": jnp.zeros((3 * hidden,), jnp.float32),
            "wo": normal(next(keys), (hidden, hidden), _MXU_DTYPE),
            "bo": jnp.zeros((hidden,), jnp.float32),
            "ln1_g": jnp.ones((hidden,), jnp.float32),
            "ln1_b": jnp.zeros((hidden,), jnp.float32),
            "w_ff1": normal(next(keys), (hidden, ffn), _MXU_DTYPE),
            "b_ff1": jnp.zeros((ffn,), jnp.float32),
            "w_ff2": normal(next(keys), (ffn, hidden), _MXU_DTYPE),
            "b_ff2": jnp.zeros((hidden,), jnp.float32),
            "ln2_g": jnp.ones((hidden,), jnp.float32),
            "ln2_b": jnp.zeros((hidden,), jnp.float32),
        }
        params["layers"].append(lyr)
    return params


# ---------------------------------------------------------------------------
# DiffusionBERT forward (mirrors the PyTorch module)
# ---------------------------------------------------------------------------
def diffusion_bert_forward(params, x_ids, t, attention_mask, *, n_heads):
    # The PyTorch forward ignores t / attention_mask (never passed to BERT).
    del t, attention_mask
    B, S = x_ids.shape
    V, H = params["word_emb"].shape

    # Word-embedding gather is glue in plain JAX (data-dependent row gather);
    # pos/type adds + LayerNorm are fused in one Pallas call.
    word = jnp.take(params["word_emb"], x_ids, axis=0)          # [B, S, H]
    h = pallas_embed_layernorm(word, params["pos_emb"][:S], params["type_emb"][0],
                               params["emb_ln_g"], params["emb_ln_b"])

    for lyr in params["layers"]:
        h = pallas_attention_block(h, lyr, n_heads=n_heads)     # [B, S, H]
        h = pallas_ffn_block(h.reshape(B * S, H), lyr).reshape(B, S, H)

    tr = pallas_mlm_transform(h.reshape(B * S, H), params["mlm_w"],
                              params["mlm_b"], params["mlm_ln_g"],
                              params["mlm_ln_b"])
    probs = pallas_decoder_softmax(tr, params["word_emb_bf16"],
                                   params["decoder_b"])
    return probs.reshape(B, S, V)


# ---------------------------------------------------------------------------
if __name__ == "__main__":
    VOCAB = 128
    HIDDEN = 32
    N_HEADS = 2
    N_LAYERS = 2
    FFN = 64
    MAX_POS = 16
    BATCH = 2
    SEQ = 8

    key = jax.random.PRNGKey(0)
    k_params, k_ids = jax.random.split(key)
    params = init_params(
        k_params, vocab_size=VOCAB, hidden=HIDDEN, n_layers=N_LAYERS,
        n_heads=N_HEADS, ffn=FFN, max_pos=MAX_POS)

    x_ids = jax.random.randint(k_ids, (BATCH, SEQ), 0, VOCAB, dtype=jnp.int32)
    t = jnp.array(3, dtype=jnp.int32)                            # unused (as in PyTorch)
    attention_mask = jnp.ones((BATCH, SEQ, VOCAB), jnp.float32)  # unused (as in PyTorch)

    fwd = jax.jit(functools.partial(diffusion_bert_forward, n_heads=N_HEADS))
    probs = jax.block_until_ready(fwd(params, x_ids, t, attention_mask))

    assert probs.shape == (BATCH, SEQ, VOCAB), probs.shape
    assert not bool(jnp.isnan(probs).any())
    row_sums = jnp.sum(probs, axis=-1)
    assert bool(jnp.allclose(row_sums, 1.0, atol=1e-4)), row_sums
    print("KERNEL_OK")
</pallas_src>

<mosaic_0001>
module attributes {stable_mosaic.version = 11 : i64} {
  func.func @_embed_ln_kernel(%arg0: i32, %arg1: memref<1x8x32xf32, #tpu.memory_space<vmem>>, %arg2: memref<8x32xf32, #tpu.memory_space<vmem>>, %arg3: memref<1x32xf32, #tpu.memory_space<vmem>>, %arg4: memref<1x32xf32, #tpu.memory_space<vmem>>, %arg5: memref<1x32xf32, #tpu.memory_space<vmem>>, %arg6: memref<1x8x32xf32, #tpu.memory_space<vmem>>) attributes {dimension_semantics = [#tpu.dimension_semantics<parallel>], iteration_bounds = array<i64: 2>, scalar_prefetch = 0 : i64, scratch_operands = 0 : i64, tpu.core_type = #tpu.core_type<tc>, window_params = [{transform_indices = @transform_0, window_bounds = array<i64: 1, 8, 32>}, {pipeline_mode = #tpu.pipeline_mode<synchronous>, transform_indices = @transform_1, window_bounds = array<i64: 8, 32>}, {pipeline_mode = #tpu.pipeline_mode<synchronous>, transform_indices = @transform_2, window_bounds = array<i64: 1, 32>}, {pipeline_mode = #tpu.pipeline_mode<synchronous>, transform_indices = @transform_3, window_bounds = array<i64: 1, 32>}, {pipeline_mode = #tpu.pipeline_mode<synchronous>, transform_indices = @transform_4, window_bounds = array<i64: 1, 32>}, {transform_indices = @transform_5, window_bounds = array<i64: 1, 8, 32>}]} {
    %c0 = arith.constant 0 : index
    %c0_0 = arith.constant 0 : index
    %c0_1 = arith.constant 0 : index
    %0 = vector.load %arg1[%c0, %c0_0, %c0_1] : memref<1x8x32xf32, #tpu.memory_space<vmem>>, vector<1x8x32xf32>
    %1 = vector.shape_cast %0 : vector<1x8x32xf32> to vector<8x32xf32>
    %c0_2 = arith.constant 0 : index
    %c0_3 = arith.constant 0 : index
    %2 = vector.load %arg2[%c0_2, %c0_3] : memref<8x32xf32, #tpu.memory_space<vmem>>, vector<8x32xf32>
    %3 = arith.addf %1, %2 : vector<8x32xf32>
    %c0_4 = arith.constant 0 : index
    %c0_5 = arith.constant 0 : index
    %4 = vector.load %arg3[%c0_4, %c0_5] : memref<1x32xf32, #tpu.memory_space<vmem>>, vector<1x32xf32>
    %5 = vector.broadcast %4 : vector<1x32xf32> to vector<8x32xf32>
    %6 = arith.addf %3, %5 : vector<8x32xf32>
    %c0_6 = arith.constant 0 : index
    %c0_7 = arith.constant 0 : index
    %7 = vector.load %arg4[%c0_6, %c0_7] : memref<1x32xf32, #tpu.memory_space<vmem>>, vector<1x32xf32>
    %c0_8 = arith.constant 0 : index
    %c0_9 = arith.constant 0 : index
    %8 = vector.load %arg5[%c0_8, %c0_9] : memref<1x32xf32, #tpu.memory_space<vmem>>, vector<1x32xf32>
    %cst = arith.constant dense<0.000000e+00> : vector<8xf32>
    %9 = vector.multi_reduction <add>, %6, %cst [1] : vector<8x32xf32> to vector<8xf32>
    %10 = vector.shape_cast %9 : vector<8xf32> to vector<8x1xf32>
    %cst_10 = arith.constant 3.200000e+01 : f32
    %11 = vector.broadcast %cst_10 : f32 to vector<8x1xf32>
    %12 = arith.divf %10, %11 : vector<8x1xf32>
    %13 = vector.broadcast %12 : vector<8x1xf32> to vector<8x32xf32>
    %14 = arith.subf %6, %13 : vector<8x32xf32>
    %15 = arith.mulf %14, %14 : vector<8x32xf32>
    %cst_11 = arith.constant dense<0.000000e+00> : vector<8xf32>
    %16 = vector.multi_reduction <add>, %15, %cst_11 [1] : vector<8x32xf32> to vector<8xf32>
    %17 = vector.shape_cast %16 : vector<8xf32> to vector<8x1xf32>
    %cst_12 = arith.constant 3.200000e+01 : f32
    %18 = vector.broadcast %cst_12 : f32 to vector<8x1xf32>
    %19 = arith.divf %17, %18 : vector<8x1xf32>
    %20 = vector.broadcast %12 : vector<8x1xf32> to vector<8x32xf32>
    %21 = arith.subf %6, %20 : vector<8x32xf32>
    %cst_13 = arith.constant 9.99999996E-13 : f32
    %22 = vector.broadcast %cst_13 : f32 to vector<8x1xf32>
    %23 = arith.addf %19, %22 : vector<8x1xf32>
    %24 = math.rsqrt %23 : vector<8x1xf32>
    %25 = vector.broadcast %24 : vector<8x1xf32> to vector<8x32xf32>
    %26 = arith.mulf %21, %25 : vector<8x32xf32>
    %27 = vector.broadcast %7 : vector<1x32xf32> to vector<8x32xf32>
    %28 = arith.mulf %26, %27 : vector<8x32xf32>
    %29 = vector.broadcast %8 : vector<1x32xf32> to vector<8x32xf32>
    %30 = arith.addf %28, %29 : vector<8x32xf32>
    %c0_14 = arith.constant 0 : index
    %c0_15 = arith.constant 0 : index
    %c0_16 = arith.constant 0 : index
    %31 = vector.load %arg6[%c0_14, %c0_15, %c0_16] : memref<1x8x32xf32, #tpu.memory_space<vmem>>, vector<1x8x32xf32>
    %32 = vector.shape_cast %31 : vector<1x8x32xf32> to vector<8x32xf32>
    %33 = vector.shape_cast %30 : vector<8x32xf32> to vector<1x8x32xf32>
    tpu.vector_store %arg6[%c0_14, %c0_15, %c0_16], %33 {strides = array<i32>} : memref<1x8x32xf32, #tpu.memory_space<vmem>>, vector<1x8x32xf32>,
    return
  }
  func.func @transform_0(%arg0: i32) -> (i32, i32, i32) {
    %c0_i32 = arith.constant 0 : i32
    %c0_i32_0 = arith.constant 0 : i32
    %c0_i32_1 = arith.constant 0 : i32
    return %arg0, %c0_i32, %c0_i32_0 : i32, i32, i32
  }
  func.func @transform_1(%arg0: i32) -> (i32, i32) {
    %c0_i32 = arith.constant 0 : i32
    %c0_i32_0 = arith.constant 0 : i32
    %c0_i32_1 = arith.constant 0 : i32
    return %c0_i32, %c0_i32_0 : i32, i32
  }
  func.func @transform_2(%arg0: i32) -> (i32, i32) {
    %c0_i32 = arith.constant 0 : i32
    %c0_i32_0 = arith.constant 0 : i32
    %c0_i32_1 = arith.constant 0 : i32
    return %c0_i32, %c0_i32_0 : i32, i32
  }
  func.func @transform_3(%arg0: i32) -> (i32, i32) {
    %c0_i32 = arith.constant 0 : i32
    %c0_i32_0 = arith.constant 0 : i32
    %c0_i32_1 = arith.constant 0 : i32
    return %c0_i32, %c0_i32_0 : i32, i32
  }
  func.func @transform_4(%arg0: i32) -> (i32, i32) {
    %c0_i32 = arith.constant 0 : i32
    %c0_i32_0 = arith.constant 0 : i32
    %c0_i32_1 = arith.constant 0 : i32
    return %c0_i32, %c0_i32_0 : i32, i32
  }
  func.func @transform_5(%arg0: i32) -> (i32, i32, i32) {
    %c0_i32 = arith.constant 0 : i32
    %c0_i32_0 = arith.constant 0 : i32
    %c0_i32_1 = arith.constant 0 : i32
    return %arg0, %c0_i32, %c0_i32_0 : i32, i32, i32
  }
}

module attributes {stable_mosaic.version = 11 : i64} {
  func.func @_attn_block_kernel(%arg0: i32, %arg1: memref<1x8x32xf32, #tpu.memory_space<vmem>>, %arg2: memref<32x96xbf16, #tpu.memory_space<vmem>>, %arg3: memref<1x96xf32, #tpu.memory_space<vmem>>, %arg4: memref<32x32xbf16, #tpu.memory_space<vmem>>, %arg5: memref<1x32xf32, #tpu.memory_space<vmem>>, %arg6: memref<1x32xf32, #tpu.memory_space<vmem>>, %arg7: memref<1x32xf32, #tpu.memory_space<vmem>>, %arg8: memref<1x8x32xf32, #tpu.memory_space<vmem>>) attributes {dimension_semantics = [#tpu.dimension_semantics<parallel>], iteration_bounds = array<i64: 2>, scalar_prefetch = 0 : i64, scratch_operands = 0 : i64, tpu.core_type = #tpu.core_type<tc>, window_params = [{transform_indices = @transform_0, window_bounds = array<i64: 1, 8, 32>}, {pipeline_mode = #tpu.pipeline_mode<synchronous>, transform_indices = @transform_1, window_bounds = array<i64: 32, 96>}, {pipeline_mode = #tpu.pipeline_mode<synchronous>, transform_indices = @transform_2, window_bounds = array<i64: 1, 96>}, {pipeline_mode = #tpu.pipeline_mode<synchronous>, transform_indices = @transform_3, window_bounds = array<i64: 32, 32>}, {pipeline_mode = #tpu.pipeline_mode<synchronous>, transform_indices = @transform_4, window_bounds = array<i64: 1, 32>}, {pipeline_mode = #tpu.pipeline_mode<synchronous>, transform_indices = @transform_5, window_bounds = array<i64: 1, 32>}, {pipeline_mode = #tpu.pipeline_mode<synchronous>, transform_indices = @transform_6, window_bounds = array<i64: 1, 32>}, {transform_indices = @transform_7, window_bounds = array<i64: 1, 8, 32>}]} {
    %c0 = arith.constant 0 : index
    %c0_0 = arith.constant 0 : index
    %c0_1 = arith.constant 0 : index
    %0 = vector.load %arg1[%c0, %c0_0, %c0_1] : memref<1x8x32xf32, #tpu.memory_space<vmem>>, vector<1x8x32xf32>
    %1 = vector.shape_cast %0 : vector<1x8x32xf32> to vector<8x32xf32>
    %c0_2 = arith.constant 0 : index
    %c0_3 = arith.constant 0 : index
    %2 = vector.load %arg2[%c0_2, %c0_3] : memref<32x96xbf16, #tpu.memory_space<vmem>>, vector<32x96xbf16>
    %3 = arith.truncf %1 : vector<8x32xf32> to vector<8x32xbf16>
    %cst = arith.constant dense<0.000000e+00> : vector<8x96xf32>
    %4 = tpu.matmul %3, %2, %cst {dimension_numbers = #tpu.dot_dimension_numbers<[1], [0], [0], [1], [0, 0, 1, 1], [], []>} : vector<8x32xbf16>, vector<32x96xbf16>, vector<8x96xf32> -> vector<8x96xf32>
    %c0_4 = arith.constant 0 : index
    %c0_5 = arith.constant 0 : index
    %5 = vector.load %arg3[%c0_4, %c0_5] : memref<1x96xf32, #tpu.memory_space<vmem>>, vector<1x96xf32>
    %6 = vector.broadcast %5 : vector<1x96xf32> to vector<8x96xf32>
    %7 = arith.addf %4, %6 : vector<8x96xf32>
    %8 = vector.extract_strided_slice %7 {offsets = [0, 0], sizes = [8, 16], strides = [1, 1]} : vector<8x96xf32> to vector<8x16xf32>
    %cst_6 = arith.constant 2.500000e-01 : f32
    %9 = vector.broadcast %cst_6 : f32 to vector<8x16xf32>
    %10 = arith.mulf %8, %9 : vector<8x16xf32>
    %11 = arith.truncf %10 : vector<8x16xf32> to vector<8x16xbf16>
    %12 = vector.extract_strided_slice %7 {offsets = [0, 32], sizes = [8, 16], strides = [1, 1]} : vector<8x96xf32> to vector<8x16xf32>
    %13 = arith.truncf %12 : vector<8x16xf32> to vector<8x16xbf16>
    %14 = vector.extract_strided_slice %7 {offsets = [0, 64], sizes = [8, 16], strides = [1, 1]} : vector<8x96xf32> to vector<8x16xf32>
    %15 = arith.truncf %14 : vector<8x16xf32> to vector<8x16xbf16>
    %cst_7 = arith.constant dense<0.000000e+00> : vector<8x8xf32>
    %16 = tpu.matmul %11, %13, %cst_7 {dimension_numbers = #tpu.dot_dimension_numbers<[1], [1], [0], [0], [0, 0, 1, 0], [], []>} : vector<8x16xbf16>, vector<8x16xbf16>, vector<8x8xf32> -> vector<8x8xf32>
    %cst_8 = arith.constant dense<0xFF800000> : vector<8xf32>
    %17 = vector.multi_reduction <maximumf>, %16, %cst_8 [1] : vector<8x8xf32> to vector<8xf32>
    %18 = vector.shape_cast %17 : vector<8xf32> to vector<8x1xf32>
    %19 = vector.broadcast %18 : vector<8x1xf32> to vector<8x8xf32>
    %20 = arith.subf %16, %19 : vector<8x8xf32>
    %21 = math.exp %20 : vector<8x8xf32>
    %cst_9 = arith.constant dense<0.000000e+00> : vector<8xf32>
    %22 = vector.multi_reduction <add>, %21, %cst_9 [1] : vector<8x8xf32> to vector<8xf32>
    %23 = vector.shape_cast %22 : vector<8xf32> to vector<8x1xf32>
    %24 = tpu.reciprocal %23 {approx = true} : vector<8x1xf32> -> vector<8x1xf32>
    %25 = arith.truncf %21 : vector<8x8xf32> to vector<8x8xbf16>
    %cst_10 = arith.constant dense<0.000000e+00> : vector<8x16xf32>
    %26 = tpu.matmul %25, %15, %cst_10 {dimension_numbers = #tpu.dot_dimension_numbers<[1], [0], [0], [1], [0, 0, 1, 1], [], []>} : vector<8x8xbf16>, vector<8x16xbf16>, vector<8x16xf32> -> vector<8x16xf32>
    %27 = vector.broadcast %24 : vector<8x1xf32> to vector<8x16xf32>
    %28 = arith.mulf %26, %27 : vector<8x16xf32>
    %29 = vector.extract_strided_slice %7 {offsets = [0, 16], sizes = [8, 16], strides = [1, 1]} : vector<8x96xf32> to vector<8x16xf32>
    %cst_11 = arith.constant 2.500000e-01 : f32
    %30 = vector.broadcast %cst_11 : f32 to vector<8x16xf32>
    %31 = arith.mulf %29, %30 : vector<8x16xf32>
    %32 = arith.truncf %31 : vector<8x16xf32> to vector<8x16xbf16>
    %33 = vector.extract_strided_slice %7 {offsets = [0, 48], sizes = [8, 16], strides = [1, 1]} : vector<8x96xf32> to vector<8x16xf32>
    %34 = arith.truncf %33 : vector<8x16xf32> to vector<8x16xbf16>
    %35 = vector.extract_strided_slice %7 {offsets = [0, 80], sizes = [8, 16], strides = [1, 1]} : vector<8x96xf32> to vector<8x16xf32>
    %36 = arith.truncf %35 : vector<8x16xf32> to vector<8x16xbf16>
    %cst_12 = arith.constant dense<0.000000e+00> : vector<8x8xf32>
    %37 = tpu.matmul %32, %34, %cst_12 {dimension_numbers = #tpu.dot_dimension_numbers<[1], [1], [0], [0], [0, 0, 1, 0], [], []>} : vector<8x16xbf16>, vector<8x16xbf16>, vector<8x8xf32> -> vector<8x8xf32>
    %cst_13 = arith.constant dense<0xFF800000> : vector<8xf32>
    %38 = vector.multi_reduction <maximumf>, %37, %cst_13 [1] : vector<8x8xf32> to vector<8xf32>
    %39 = vector.shape_cast %38 : vector<8xf32> to vector<8x1xf32>
    %40 = vector.broadcast %39 : vector<8x1xf32> to vector<8x8xf32>
    %41 = arith.subf %37, %40 : vector<8x8xf32>
    %42 = math.exp %41 : vector<8x8xf32>
    %cst_14 = arith.constant dense<0.000000e+00> : vector<8xf32>
    %43 = vector.multi_reduction <add>, %42, %cst_14 [1] : vector<8x8xf32> to vector<8xf32>
    %44 = vector.shape_cast %43 : vector<8xf32> to vector<8x1xf32>
    %45 = tpu.reciprocal %44 {approx = true} : vector<8x1xf32> -> vector<8x1xf32>
    %46 = arith.truncf %42 : vector<8x8xf32> to vector<8x8xbf16>
    %cst_15 = arith.constant dense<0.000000e+00> : vector<8x16xf32>
    %47 = tpu.matmul %46, %36, %cst_15 {dimension_numbers = #tpu.dot_dimension_numbers<[1], [0], [0], [1], [0, 0, 1, 1], [], []>} : vector<8x8xbf16>, vector<8x16xbf16>, vector<8x16xf32> -> vector<8x16xf32>
    %48 = vector.broadcast %45 : vector<8x1xf32> to vector<8x16xf32>
    %49 = arith.mulf %47, %48 : vector<8x16xf32>
    %50 = tpu.concatenate %28, %49 in 1 : vector<8x16xf32>, vector<8x16xf32> -> vector<8x32xf32>
    %c0_16 = arith.constant 0 : index
    %c0_17 = arith.constant 0 : index
    %51 = vector.load %arg4[%c0_16, %c0_17] : memref<32x32xbf16, #tpu.memory_space<vmem>>, vector<32x32xbf16>
    %52 = arith.truncf %50 : vector<8x32xf32> to vector<8x32xbf16>
    %cst_18 = arith.constant dense<0.000000e+00> : vector<8x32xf32>
    %53 = tpu.matmul %52, %51, %cst_18 {dimension_numbers = #tpu.dot_dimension_numbers<[1], [0], [0], [1], [0, 0, 1, 1], [], []>} : vector<8x32xbf16>, vector<32x32xbf16>, vector<8x32xf32> -> vector<8x32xf32>
    %c0_19 = arith.constant 0 : index
    %c0_20 = arith.constant 0 : index
    %54 = vector.load %arg5[%c0_19, %c0_20] : memref<1x32xf32, #tpu.memory_space<vmem>>, vector<1x32xf32>
    %55 = vector.broadcast %54 : vector<1x32xf32> to vector<8x32xf32>
    %56 = arith.addf %53, %55 : vector<8x32xf32>
    %57 = arith.addf %56, %1 : vector<8x32xf32>
    %c0_21 = arith.constant 0 : index
    %c0_22 = arith.constant 0 : index
    %58 = vector.load %arg6[%c0_21, %c0_22] : memref<1x32xf32, #tpu.memory_space<vmem>>, vector<1x32xf32>
    %c0_23 = arith.constant 0 : index
    %c0_24 = arith.constant 0 : index
    %59 = vector.load %arg7[%c0_23, %c0_24] : memref<1x32xf32, #tpu.memory_space<vmem>>, vector<1x32xf32>
    %cst_25 = arith.constant dense<0.000000e+00> : vector<8xf32>
    %60 = vector.multi_reduction <add>, %57, %cst_25 [1] : vector<8x32xf32> to vector<8xf32>
    %61 = vector.shape_cast %60 : vector<8xf32> to vector<8x1xf32>
    %cst_26 = arith.constant 3.200000e+01 : f32
    %62 = vector.broadcast %cst_26 : f32 to vector<8x1xf32>
    %63 = arith.divf %61, %62 : vector<8x1xf32>
    %64 = vector.broadcast %63 : vector<8x1xf32> to vector<8x32xf32>
    %65 = arith.subf %57, %64 : vector<8x32xf32>
    %66 = arith.mulf %65, %65 : vector<8x32xf32>
    %cst_27 = arith.constant dense<0.000000e+00> : vector<8xf32>
    %67 = vector.multi_reduction <add>, %66, %cst_27 [1] : vector<8x32xf32> to vector<8xf32>
    %68 = vector.shape_cast %67 : vector<8xf32> to vector<8x1xf32>
    %cst_28 = arith.constant 3.200000e+01 : f32
    %69 = vector.broadcast %cst_28 : f32 to vector<8x1xf32>
    %70 = arith.divf %68, %69 : vector<8x1xf32>
    %71 = vector.broadcast %63 : vector<8x1xf32> to vector<8x32xf32>
    %72 = arith.subf %57, %71 : vector<8x32xf32>
    %cst_29 = arith.constant 9.99999996E-13 : f32
    %73 = vector.broadcast %cst_29 : f32 to vector<8x1xf32>
    %74 = arith.addf %70, %73 : vector<8x1xf32>
    %75 = math.rsqrt %74 : vector<8x1xf32>
    %76 = vector.broadcast %75 : vector<8x1xf32> to vector<8x32xf32>
    %77 = arith.mulf %72, %76 : vector<8x32xf32>
    %78 = vector.broadcast %58 : vector<1x32xf32> to vector<8x32xf32>
    %79 = arith.mulf %77, %78 : vector<8x32xf32>
    %80 = vector.broadcast %59 : vector<1x32xf32> to vector<8x32xf32>
    %81 = arith.addf %79, %80 : vector<8x32xf32>
    %c0_30 = arith.constant 0 : index
    %c0_31 = arith.constant 0 : index
    %c0_32 = arith.constant 0 : index
    %82 = vector.load %arg8[%c0_30, %c0_31, %c0_32] : memref<1x8x32xf32, #tpu.memory_space<vmem>>, vector<1x8x32xf32>
    %83 = vector.shape_cast %82 : vector<1x8x32xf32> to vector<8x32xf32>
    %84 = vector.shape_cast %81 : vector<8x32xf32> to vector<1x8x32xf32>
    tpu.vector_store %arg8[%c0_30, %c0_31, %c0_32], %84 {strides = array<i32>} : memref<1x8x32xf32, #tpu.memory_space<vmem>>, vector<1x8x32xf32>,
    return
  }
  func.func @transform_0(%arg0: i32) -> (i32, i32, i32) {
    %c0_i32 = arith.constant 0 : i32
    %c0_i32_0 = arith.constant 0 : i32
    %c0_i32_1 = arith.constant 0 : i32
    return %arg0, %c0_i32, %c0_i32_0 : i32, i32, i32
  }
  func.func @transform_1(%arg0: i32) -> (i32, i32) {
    %c0_i32 = arith.constant 0 : i32
    %c0_i32_0 = arith.constant 0 : i32
    %c0_i32_1 = arith.constant 0 : i32
    return %c0_i32, %c0_i32_0 : i32, i32
  }
  func.func @transform_2(%arg0: i32) -> (i32, i32) {
    %c0_i32 = arith.constant 0 : i32
    %c0_i32_0 = arith.constant 0 : i32
    %c0_i32_1 = arith.constant 0 : i32
    return %c0_i32, %c0_i32_0 : i32, i32
  }
  func.func @transform_3(%arg0: i32) -> (i32, i32) {
    %c0_i32 = arith.constant 0 : i32
    %c0_i32_0 = arith.constant 0 : i32
    %c0_i32_1 = arith.constant 0 : i32
    return %c0_i32, %c0_i32_0 : i32, i32
  }
  func.func @transform_4(%arg0: i32) -> (i32, i32) {
    %c0_i32 = arith.constant 0 : i32
    %c0_i32_0 = arith.constant 0 : i32
    %c0_i32_1 = arith.constant 0 : i32
    return %c0_i32, %c0_i32_0 : i32, i32
  }
  func.func @transform_5(%arg0: i32) -> (i32, i32) {
    %c0_i32 = arith.constant 0 : i32
    %c0_i32_0 = arith.constant 0 : i32
    %c0_i32_1 = arith.constant 0 : i32
    return %c0_i32, %c0_i32_0 : i32, i32
  }
  func.func @transform_6(%arg0: i32) -> (i32, i32) {
    %c0_i32 = arith.constant 0 : i32
    %c0_i32_0 = arith.constant 0 : i32
    %c0_i32_1 = arith.constant 0 : i32
    return %c0_i32, %c0_i32_0 : i32, i32
  }
  func.func @transform_7(%arg0: i32) -> (i32, i32, i32) {
    %c0_i32 = arith.constant 0 : i32
    %c0_i32_0 = arith.constant 0 : i32
    %c0_i32_1 = arith.constant 0 : i32
    return %arg0, %c0_i32, %c0_i32_0 : i32, i32, i32
  }
}

module attributes {stable_mosaic.version = 11 : i64} {
  func.func @_ffn_block_kernel(%arg0: i32, %arg1: memref<16x32xf32, #tpu.memory_space<vmem>>, %arg2: memref<32x64xbf16, #tpu.memory_space<vmem>>, %arg3: memref<1x64xf32, #tpu.memory_space<vmem>>, %arg4: memref<64x32xbf16, #tpu.memory_space<vmem>>, %arg5: memref<1x32xf32, #tpu.memory_space<vmem>>, %arg6: memref<1x32xf32, #tpu.memory_space<vmem>>, %arg7: memref<1x32xf32, #tpu.memory_space<vmem>>, %arg8: memref<16x32xf32, #tpu.memory_space<vmem>>) attributes {dimension_semantics = [#tpu.dimension_semantics<parallel>], iteration_bounds = array<i64: 1>, scalar_prefetch = 0 : i64, scratch_operands = 0 : i64, tpu.core_type = #tpu.core_type<tc>, window_params = [{transform_indices = @transform_0, window_bounds = array<i64: 16, 32>}, {pipeline_mode = #tpu.pipeline_mode<synchronous>, transform_indices = @transform_1, window_bounds = array<i64: 32, 64>}, {pipeline_mode = #tpu.pipeline_mode<synchronous>, transform_indices = @transform_2, window_bounds = array<i64: 1, 64>}, {pipeline_mode = #tpu.pipeline_mode<synchronous>, transform_indices = @transform_3, window_bounds = array<i64: 64, 32>}, {pipeline_mode = #tpu.pipeline_mode<synchronous>, transform_indices = @transform_4, window_bounds = array<i64: 1, 32>}, {pipeline_mode = #tpu.pipeline_mode<synchronous>, transform_indices = @transform_5, window_bounds = array<i64: 1, 32>}, {pipeline_mode = #tpu.pipeline_mode<synchronous>, transform_indices = @transform_6, window_bounds = array<i64: 1, 32>}, {transform_indices = @transform_7, window_bounds = array<i64: 16, 32>}]} {
    %c0 = arith.constant 0 : index
    %c0_0 = arith.constant 0 : index
    %0 = vector.load %arg1[%c0, %c0_0] : memref<16x32xf32, #tpu.memory_space<vmem>>, vector<16x32xf32>
    %c0_1 = arith.constant 0 : index
    %c0_2 = arith.constant 0 : index
    %1 = vector.load %arg2[%c0_1, %c0_2] : memref<32x64xbf16, #tpu.memory_space<vmem>>, vector<32x64xbf16>
    %2 = arith.truncf %0 : vector<16x32xf32> to vector<16x32xbf16>
    %cst = arith.constant dense<0.000000e+00> : vector<16x64xf32>
    %3 = tpu.matmul %2, %1, %cst {dimension_numbers = #tpu.dot_dimension_numbers<[1], [0], [0], [1], [0, 0, 1, 1], [], []>} : vector<16x32xbf16>, vector<32x64xbf16>, vector<16x64xf32> -> vector<16x64xf32>
    %c0_3 = arith.constant 0 : index
    %c0_4 = arith.constant 0 : index
    %4 = vector.load %arg3[%c0_3, %c0_4] : memref<1x64xf32, #tpu.memory_space<vmem>>, vector<1x64xf32>
    %5 = vector.broadcast %4 : vector<1x64xf32> to vector<16x64xf32>
    %6 = arith.addf %3, %5 : vector<16x64xf32>
    %7 = arith.mulf %6, %6 : vector<16x64xf32>
    %8 = arith.mulf %6, %7 : vector<16x64xf32>
    %cst_5 = arith.constant 4.471500e-02 : f32
    %9 = vector.broadcast %cst_5 : f32 to vector<16x64xf32>
    %10 = arith.mulf %9, %8 : vector<16x64xf32>
    %11 = arith.addf %6, %10 : vector<16x64xf32>
    %cst_6 = arith.constant 0.797884583 : f32
    %12 = vector.broadcast %cst_6 : f32 to vector<16x64xf32>
    %13 = arith.mulf %12, %11 : vector<16x64xf32>
    %14 = math.tanh %13 : vector<16x64xf32>
    %cst_7 = arith.constant 1.000000e+00 : f32
    %15 = vector.broadcast %cst_7 : f32 to vector<16x64xf32>
    %16 = arith.addf %15, %14 : vector<16x64xf32>
    %cst_8 = arith.constant 5.000000e-01 : f32
    %17 = vector.broadcast %cst_8 : f32 to vector<16x64xf32>
    %18 = arith.mulf %17, %16 : vector<16x64xf32>
    %19 = arith.mulf %6, %18 : vector<16x64xf32>
    %c0_9 = arith.constant 0 : index
    %c0_10 = arith.constant 0 : index
    %20 = vector.load %arg4[%c0_9, %c0_10] : memref<64x32xbf16, #tpu.memory_space<vmem>>, vector<64x32xbf16>
    %21 = arith.truncf %19 : vector<16x64xf32> to vector<16x64xbf16>
    %cst_11 = arith.constant dense<0.000000e+00> : vector<16x32xf32>
    %22 = tpu.matmul %21, %20, %cst_11 {dimension_numbers = #tpu.dot_dimension_numbers<[1], [0], [0], [1], [0, 0, 1, 1], [], []>} : vector<16x64xbf16>, vector<64x32xbf16>, vector<16x32xf32> -> vector<16x32xf32>
    %c0_12 = arith.constant 0 : index
    %c0_13 = arith.constant 0 : index
    %23 = vector.load %arg5[%c0_12, %c0_13] : memref<1x32xf32, #tpu.memory_space<vmem>>, vector<1x32xf32>
    %24 = vector.broadcast %23 : vector<1x32xf32> to vector<16x32xf32>
    %25 = arith.addf %22, %24 : vector<16x32xf32>
    %26 = arith.addf %25, %0 : vector<16x32xf32>
    %c0_14 = arith.constant 0 : index
    %c0_15 = arith.constant 0 : index
    %27 = vector.load %arg6[%c0_14, %c0_15] : memref<1x32xf32, #tpu.memory_space<vmem>>, vector<1x32xf32>
    %c0_16 = arith.constant 0 : index
    %c0_17 = arith.constant 0 : index
    %28 = vector.load %arg7[%c0_16, %c0_17] : memref<1x32xf32, #tpu.memory_space<vmem>>, vector<1x32xf32>
    %cst_18 = arith.constant dense<0.000000e+00> : vector<16xf32>
    %29 = vector.multi_reduction <add>, %26, %cst_18 [1] : vector<16x32xf32> to vector<16xf32>
    %30 = vector.shape_cast %29 : vector<16xf32> to vector<16x1xf32>
    %cst_19 = arith.constant 3.200000e+01 : f32
    %31 = vector.broadcast %cst_19 : f32 to vector<16x1xf32>
    %32 = arith.divf %30, %31 : vector<16x1xf32>
    %33 = vector.broadcast %32 : vector<16x1xf32> to vector<16x32xf32>
    %34 = arith.subf %26, %33 : vector<16x32xf32>
    %35 = arith.mulf %34, %34 : vector<16x32xf32>
    %cst_20 = arith.constant dense<0.000000e+00> : vector<16xf32>
    %36 = vector.multi_reduction <add>, %35, %cst_20 [1] : vector<16x32xf32> to vector<16xf32>
    %37 = vector.shape_cast %36 : vector<16xf32> to vector<16x1xf32>
    %cst_21 = arith.constant 3.200000e+01 : f32
    %38 = vector.broadcast %cst_21 : f32 to vector<16x1xf32>
    %39 = arith.divf %37, %38 : vector<16x1xf32>
    %40 = vector.broadcast %32 : vector<16x1xf32> to vector<16x32xf32>
    %41 = arith.subf %26, %40 : vector<16x32xf32>
    %cst_22 = arith.constant 9.99999996E-13 : f32
    %42 = vector.broadcast %cst_22 : f32 to vector<16x1xf32>
    %43 = arith.addf %39, %42 : vector<16x1xf32>
    %44 = math.rsqrt %43 : vector<16x1xf32>
    %45 = vector.broadcast %44 : vector<16x1xf32> to vector<16x32xf32>
    %46 = arith.mulf %41, %45 : vector<16x32xf32>
    %47 = vector.broadcast %27 : vector<1x32xf32> to vector<16x32xf32>
    %48 = arith.mulf %46, %47 : vector<16x32xf32>
    %49 = vector.broadcast %28 : vector<1x32xf32> to vector<16x32xf32>
    %50 = arith.addf %48, %49 : vector<16x32xf32>
    %c0_23 = arith.constant 0 : index
    %c0_24 = arith.constant 0 : index
    %51 = vector.load %arg8[%c0_23, %c0_24] : memref<16x32xf32, #tpu.memory_space<vmem>>, vector<16x32xf32>
    tpu.vector_store %arg8[%c0_23, %c0_24], %50 {strides = array<i32>} : memref<16x32xf32, #tpu.memory_space<vmem>>, vector<16x32xf32>,
    return
  }
  func.func @transform_0(%arg0: i32) -> (i32, i32) {
    %c0_i32 = arith.constant 0 : i32
    %c0_i32_0 = arith.constant 0 : i32
    return %arg0, %c0_i32 : i32, i32
  }
  func.func @transform_1(%arg0: i32) -> (i32, i32) {
    %c0_i32 = arith.constant 0 : i32
    %c0_i32_0 = arith.constant 0 : i32
    %c0_i32_1 = arith.constant 0 : i32
    return %c0_i32, %c0_i32_0 : i32, i32
  }
  func.func @transform_2(%arg0: i32) -> (i32, i32) {
    %c0_i32 = arith.constant 0 : i32
    %c0_i32_0 = arith.constant 0 : i32
    %c0_i32_1 = arith.constant 0 : i32
    return %c0_i32, %c0_i32_0 : i32, i32
  }
  func.func @transform_3(%arg0: i32) -> (i32, i32) {
    %c0_i32 = arith.constant 0 : i32
    %c0_i32_0 = arith.constant 0 : i32
    %c0_i32_1 = arith.constant 0 : i32
    return %c0_i32, %c0_i32_0 : i32, i32
  }
  func.func @transform_4(%arg0: i32) -> (i32, i32) {
    %c0_i32 = arith.constant 0 : i32
    %c0_i32_0 = arith.constant 0 : i32
    %c0_i32_1 = arith.constant 0 : i32
    return %c0_i32, %c0_i32_0 : i32, i32
  }
  func.func @transform_5(%arg0: i32) -> (i32, i32) {
    %c0_i32 = arith.constant 0 : i32
    %c0_i32_0 = arith.constant 0 : i32
    %c0_i32_1 = arith.constant 0 : i32
    return %c0_i32, %c0_i32_0 : i32, i32
  }
  func.func @transform_6(%arg0: i32) -> (i32, i32) {
    %c0_i32 = arith.constant 0 : i32
    %c0_i32_0 = arith.constant 0 : i32
    %c0_i32_1 = arith.constant 0 : i32
    return %c0_i32, %c0_i32_0 : i32, i32
  }
  func.func @transform_7(%arg0: i32) -> (i32, i32) {
    %c0_i32 = arith.constant 0 : i32
    %c0_i32_0 = arith.constant 0 : i32
    return %arg0, %c0_i32 : i32, i32
  }
}

module attributes {stable_mosaic.version = 11 : i64} {
  func.func @_dense_gelu_ln_kernel(%arg0: i32, %arg1: memref<16x32xf32, #tpu.memory_space<vmem>>, %arg2: memref<32x32xbf16, #tpu.memory_space<vmem>>, %arg3: memref<1x32xf32, #tpu.memory_space<vmem>>, %arg4: memref<1x32xf32, #tpu.memory_space<vmem>>, %arg5: memref<1x32xf32, #tpu.memory_space<vmem>>, %arg6: memref<16x32xf32, #tpu.memory_space<vmem>>) attributes {dimension_semantics = [#tpu.dimension_semantics<parallel>], iteration_bounds = array<i64: 1>, scalar_prefetch = 0 : i64, scratch_operands = 0 : i64, tpu.core_type = #tpu.core_type<tc>, window_params = [{transform_indices = @transform_0, window_bounds = array<i64: 16, 32>}, {pipeline_mode = #tpu.pipeline_mode<synchronous>, transform_indices = @transform_1, window_bounds = array<i64: 32, 32>}, {pipeline_mode = #tpu.pipeline_mode<synchronous>, transform_indices = @transform_2, window_bounds = array<i64: 1, 32>}, {pipeline_mode = #tpu.pipeline_mode<synchronous>, transform_indices = @transform_3, window_bounds = array<i64: 1, 32>}, {pipeline_mode = #tpu.pipeline_mode<synchronous>, transform_indices = @transform_4, window_bounds = array<i64: 1, 32>}, {transform_indices = @transform_5, window_bounds = array<i64: 16, 32>}]} {
    %c0 = arith.constant 0 : index
    %c0_0 = arith.constant 0 : index
    %0 = vector.load %arg1[%c0, %c0_0] : memref<16x32xf32, #tpu.memory_space<vmem>>, vector<16x32xf32>
    %c0_1 = arith.constant 0 : index
    %c0_2 = arith.constant 0 : index
    %1 = vector.load %arg2[%c0_1, %c0_2] : memref<32x32xbf16, #tpu.memory_space<vmem>>, vector<32x32xbf16>
    %2 = arith.truncf %0 : vector<16x32xf32> to vector<16x32xbf16>
    %cst = arith.constant dense<0.000000e+00> : vector<16x32xf32>
    %3 = tpu.matmul %2, %1, %cst {dimension_numbers = #tpu.dot_dimension_numbers<[1], [0], [0], [1], [0, 0, 1, 1], [], []>} : vector<16x32xbf16>, vector<32x32xbf16>, vector<16x32xf32> -> vector<16x32xf32>
    %c0_3 = arith.constant 0 : index
    %c0_4 = arith.constant 0 : index
    %4 = vector.load %arg3[%c0_3, %c0_4] : memref<1x32xf32, #tpu.memory_space<vmem>>, vector<1x32xf32>
    %5 = vector.broadcast %4 : vector<1x32xf32> to vector<16x32xf32>
    %6 = arith.addf %3, %5 : vector<16x32xf32>
    %7 = arith.mulf %6, %6 : vector<16x32xf32>
    %8 = arith.mulf %6, %7 : vector<16x32xf32>
    %cst_5 = arith.constant 4.471500e-02 : f32
    %9 = vector.broadcast %cst_5 : f32 to vector<16x32xf32>
    %10 = arith.mulf %9, %8 : vector<16x32xf32>
    %11 = arith.addf %6, %10 : vector<16x32xf32>
    %cst_6 = arith.constant 0.797884583 : f32
    %12 = vector.broadcast %cst_6 : f32 to vector<16x32xf32>
    %13 = arith.mulf %12, %11 : vector<16x32xf32>
    %14 = math.tanh %13 : vector<16x32xf32>
    %cst_7 = arith.constant 1.000000e+00 : f32
    %15 = vector.broadcast %cst_7 : f32 to vector<16x32xf32>
    %16 = arith.addf %15, %14 : vector<16x32xf32>
    %cst_8 = arith.constant 5.000000e-01 : f32
    %17 = vector.broadcast %cst_8 : f32 to vector<16x32xf32>
    %18 = arith.mulf %17, %16 : vector<16x32xf32>
    %19 = arith.mulf %6, %18 : vector<16x32xf32>
    %c0_9 = arith.constant 0 : index
    %c0_10 = arith.constant 0 : index
    %20 = vector.load %arg4[%c0_9, %c0_10] : memref<1x32xf32, #tpu.memory_space<vmem>>, vector<1x32xf32>
    %c0_11 = arith.constant 0 : index
    %c0_12 = arith.constant 0 : index
    %21 = vector.load %arg5[%c0_11, %c0_12] : memref<1x32xf32, #tpu.memory_space<vmem>>, vector<1x32xf32>
    %cst_13 = arith.constant dense<0.000000e+00> : vector<16xf32>
    %22 = vector.multi_reduction <add>, %19, %cst_13 [1] : vector<16x32xf32> to vector<16xf32>
    %23 = vector.shape_cast %22 : vector<16xf32> to vector<16x1xf32>
    %cst_14 = arith.constant 3.200000e+01 : f32
    %24 = vector.broadcast %cst_14 : f32 to vector<16x1xf32>
    %25 = arith.divf %23, %24 : vector<16x1xf32>
    %26 = vector.broadcast %25 : vector<16x1xf32> to vector<16x32xf32>
    %27 = arith.subf %19, %26 : vector<16x32xf32>
    %28 = arith.mulf %27, %27 : vector<16x32xf32>
    %cst_15 = arith.constant dense<0.000000e+00> : vector<16xf32>
    %29 = vector.multi_reduction <add>, %28, %cst_15 [1] : vector<16x32xf32> to vector<16xf32>
    %30 = vector.shape_cast %29 : vector<16xf32> to vector<16x1xf32>
    %cst_16 = arith.constant 3.200000e+01 : f32
    %31 = vector.broadcast %cst_16 : f32 to vector<16x1xf32>
    %32 = arith.divf %30, %31 : vector<16x1xf32>
    %33 = vector.broadcast %25 : vector<16x1xf32> to vector<16x32xf32>
    %34 = arith.subf %19, %33 : vector<16x32xf32>
    %cst_17 = arith.constant 9.99999996E-13 : f32
    %35 = vector.broadcast %cst_17 : f32 to vector<16x1xf32>
    %36 = arith.addf %32, %35 : vector<16x1xf32>
    %37 = math.rsqrt %36 : vector<16x1xf32>
    %38 = vector.broadcast %37 : vector<16x1xf32> to vector<16x32xf32>
    %39 = arith.mulf %34, %38 : vector<16x32xf32>
    %40 = vector.broadcast %20 : vector<1x32xf32> to vector<16x32xf32>
    %41 = arith.mulf %39, %40 : vector<16x32xf32>
    %42 = vector.broadcast %21 : vector<1x32xf32> to vector<16x32xf32>
    %43 = arith.addf %41, %42 : vector<16x32xf32>
    %c0_18 = arith.constant 0 : index
    %c0_19 = arith.constant 0 : index
    %44 = vector.load %arg6[%c0_18, %c0_19] : memref<16x32xf32, #tpu.memory_space<vmem>>, vector<16x32xf32>
    tpu.vector_store %arg6[%c0_18, %c0_19], %43 {strides = array<i32>} : memref<16x32xf32, #tpu.memory_space<vmem>>, vector<16x32xf32>,
    return
  }
  func.func @transform_0(%arg0: i32) -> (i32, i32) {
    %c0_i32 = arith.constant 0 : i32
    %c0_i32_0 = arith.constant 0 : i32
    return %arg0, %c0_i32 : i32, i32
  }
  func.func @transform_1(%arg0: i32) -> (i32, i32) {
    %c0_i32 = arith.constant 0 : i32
    %c0_i32_0 = arith.constant 0 : i32
    %c0_i32_1 = arith.constant 0 : i32
    return %c0_i32, %c0_i32_0 : i32, i32
  }
  func.func @transform_2(%arg0: i32) -> (i32, i32) {
    %c0_i32 = arith.constant 0 : i32
    %c0_i32_0 = arith.constant 0 : i32
    %c0_i32_1 = arith.constant 0 : i32
    return %c0_i32, %c0_i32_0 : i32, i32
  }
  func.func @transform_3(%arg0: i32) -> (i32, i32) {
    %c0_i32 = arith.constant 0 : i32
    %c0_i32_0 = arith.constant 0 : i32
    %c0_i32_1 = arith.constant 0 : i32
    return %c0_i32, %c0_i32_0 : i32, i32
  }
  func.func @transform_4(%arg0: i32) -> (i32, i32) {
    %c0_i32 = arith.constant 0 : i32
    %c0_i32_0 = arith.constant 0 : i32
    %c0_i32_1 = arith.constant 0 : i32
    return %c0_i32, %c0_i32_0 : i32, i32
  }
  func.func @transform_5(%arg0: i32) -> (i32, i32) {
    %c0_i32 = arith.constant 0 : i32
    %c0_i32_0 = arith.constant 0 : i32
    return %arg0, %c0_i32 : i32, i32
  }
}

module attributes {stable_mosaic.version = 11 : i64} {
  func.func @_decoder_softmax_kernel(%arg0: i32, %arg1: memref<16x32xf32, #tpu.memory_space<vmem>>, %arg2: memref<128x32xbf16, #tpu.memory_space<vmem>>, %arg3: memref<1x128xf32, #tpu.memory_space<vmem>>, %arg4: memref<16x128xf32, #tpu.memory_space<vmem>>) attributes {dimension_semantics = [#tpu.dimension_semantics<parallel>], iteration_bounds = array<i64: 1>, scalar_prefetch = 0 : i64, scratch_operands = 0 : i64, tpu.core_type = #tpu.core_type<tc>, window_params = [{transform_indices = @transform_0, window_bounds = array<i64: 16, 32>}, {pipeline_mode = #tpu.pipeline_mode<synchronous>, transform_indices = @transform_1, window_bounds = array<i64: 128, 32>}, {pipeline_mode = #tpu.pipeline_mode<synchronous>, transform_indices = @transform_2, window_bounds = array<i64: 1, 128>}, {transform_indices = @transform_3, window_bounds = array<i64: 16, 128>}]} {
    %c0 = arith.constant 0 : index
    %c0_0 = arith.constant 0 : index
    %0 = vector.load %arg1[%c0, %c0_0] : memref<16x32xf32, #tpu.memory_space<vmem>>, vector<16x32xf32>
    %1 = arith.truncf %0 : vector<16x32xf32> to vector<16x32xbf16>
    %c0_1 = arith.constant 0 : index
    %c0_2 = arith.constant 0 : index
    %2 = vector.load %arg2[%c0_1, %c0_2] : memref<128x32xbf16, #tpu.memory_space<vmem>>, vector<128x32xbf16>
    %cst = arith.constant dense<0.000000e+00> : vector<16x128xf32>
    %3 = tpu.matmul %1, %2, %cst {dimension_numbers = #tpu.dot_dimension_numbers<[1], [1], [0], [0], [0, 0, 1, 0], [], []>} : vector<16x32xbf16>, vector<128x32xbf16>, vector<16x128xf32> -> vector<16x128xf32>
    %c0_3 = arith.constant 0 : index
    %c0_4 = arith.constant 0 : index
    %4 = vector.load %arg3[%c0_3, %c0_4] : memref<1x128xf32, #tpu.memory_space<vmem>>, vector<1x128xf32>
    %5 = vector.broadcast %4 : vector<1x128xf32> to vector<16x128xf32>
    %6 = arith.addf %3, %5 : vector<16x128xf32>
    %cst_5 = arith.constant dense<0xFF800000> : vector<16xf32>
    %7 = vector.multi_reduction <maximumf>, %6, %cst_5 [1] : vector<16x128xf32> to vector<16xf32>
    %8 = vector.shape_cast %7 : vector<16xf32> to vector<16x1xf32>
    %9 = vector.broadcast %8 : vector<16x1xf32> to vector<16x128xf32>
    %10 = arith.subf %6, %9 : vector<16x128xf32>
    %11 = math.exp %10 : vector<16x128xf32>
    %cst_6 = arith.constant dense<0.000000e+00> : vector<16xf32>
    %12 = vector.multi_reduction <add>, %11, %cst_6 [1] : vector<16x128xf32> to vector<16xf32>
    %13 = vector.shape_cast %12 : vector<16xf32> to vector<16x1xf32>
    %14 = vector.broadcast %13 : vector<16x1xf32> to vector<16x128xf32>
    %15 = arith.divf %11, %14 : vector<16x128xf32>
    %c0_7 = arith.constant 0 : index
    %c0_8 = arith.constant 0 : index
    %16 = vector.load %arg4[%c0_7, %c0_8] : memref<16x128xf32, #tpu.memory_space<vmem>>, vector<16x128xf32>
    tpu.vector_store %arg4[%c0_7, %c0_8], %15 {strides = array<i32>} : memref<16x128xf32, #tpu.memory_space<vmem>>, vector<16x128xf32>,
    return
  }
  func.func @transform_0(%arg0: i32) -> (i32, i32) {
    %c0_i32 = arith.constant 0 : i32
    %c0_i32_0 = arith.constant 0 : i32
    return %arg0, %c0_i32 : i32, i32
  }
  func.func @transform_1(%arg0: i32) -> (i32, i32) {
    %c0_i32 = arith.constant 0 : i32
    %c0_i32_0 = arith.constant 0 : i32
    %c0_i32_1 = arith.constant 0 : i32
    return %c0_i32, %c0_i32_0 : i32, i32
  }
  func.func @transform_2(%arg0: i32) -> (i32, i32) {
    %c0_i32 = arith.constant 0 : i32
    %c0_i32_0 = arith.constant 0 : i32
    %c0_i32_1 = arith.constant 0 : i32
    return %c0_i32, %c0_i32_0 : i32, i32
  }
  func.func @transform_3(%arg0: i32) -> (i32, i32) {
    %c0_i32 = arith.constant 0 : i32
    %c0_i32_0 = arith.constant 0 : i32
    return %arg0, %c0_i32 : i32, i32
  }
}

</mosaic_0001>

<llo_original>
// kernel: diffusion_bert_forward.7
$region0: #{diffusion_bert_forward.7}
  #allocation0 [shape = 'u32[]', space=smem, size = 0x4, offset = 0x4, fixed_abs, tag = 'smem constant byte address 0x4 - core index']
  #allocation1 [shape = 'u32[144,128]{1,0:T(1,128)}', space=vmem, size = 0x12000, scoped, tag = 'internal scratch']
  %s0 = inlined_call_operand.vmem [shape: f32[2,8,32], index: 0, kind: input, shape index: {}, may-alias: {0,5}]
  %s1 = inlined_call_operand.vmem [shape: f32[8,32], index: 1, kind: input, shape index: {}]
  %s2 = inlined_call_operand.vmem [shape: f32[1,32], index: 2, kind: input, shape index: {}]
  %s3 = inlined_call_operand.vmem [shape: f32[1,32], index: 3, kind: input, shape index: {}]
  %s4 = inlined_call_operand.vmem [shape: f32[1,32], index: 4, kind: input, shape index: {}]
  %s5 = inlined_call_operand.vmem [shape: f32[2,8,32], index: 5, kind: output, shape index: {}, may-alias: {0,5}]
  %s6 = sld [smem:[#allocation0]]
  $region53: #{diffusion_bert_forward.7} parent=0
    _
  %s8 = ssub.s32 1, %s6
  %s9 = scalar_select 0, %s8, %s6
  loop: start=0, step=1, limit=4
  $region2: #{diffusion_bert_forward.7} parent=0 // loop_pre_header
    _
  $region3: #{diffusion_bert_forward.7} parent=0 // loop_header
    %s11 = sphi 0, %s15
    %p12 = scmp.ge.s32.totalorder %s11, 4
    %s21 = sphi 0, %s23
    %s24 = sphi 0, %s21
    %s25 = sphi 0, %s24
    %s41 = sphi 0, %s25
    %s45 = sphi 0, %s45
    %s47 = sphi 0, %s45
    %s48 = sphi 0, %s47
    %s62 = sphi 0, %s48
    %s66 = sphi 0, %s66
    %s68 = sphi 0, %s66
    %s69 = sphi 0, %s68
    %s83 = sphi 0, %s69
    %s87 = sphi 0, %s87
    %s89 = sphi 0, %s87
    %s90 = sphi 0, %s89
    %s104 = sphi 0, %s90
    %s108 = sphi 0, %s108
    %s110 = sphi 0, %s108
    %s111 = sphi 0, %s110
    %s125 = sphi 0, %s111
    %s131 = sphi 0, %s133
    %s134 = sphi 0, %s131
    %s135 = sphi 0, %s134
    %s151 = sphi 0, %s135
  $region4: #{diffusion_bert_forward.7} parent=0 // loop_header_branch
    %14 = sbr.rel (%p12) target = $region8
  $region5: #{diffusion_bert_forward.7} parent=0 // loop_body
    %s16 = ssub.s32 %s11, 1
    %s17 = ssub.s32 %s11, 2
    %s18 = sadd.s32 %s11, 1
    %s19 = ssub.s32 %s11, %s18
    %p20 = scmp.eq.s32.totalorder %s19, 0
    %s22 = sadd.s32 %s21, 1
    %s23 = scalar_select %p20, %s21, %s22
    %p26 = pneg %p20
    %p27 = scmp.eq.s32.totalorder %s11, 1
    %p28 = por %p26, %p27
    %p29 = scmp.ne.s32.totalorder %s21, %s24
    %p30 = scmp.eq.s32.totalorder %s11, 0
    %p31 = por %p29, %p30
    %p32 = scmp.ne.s32.totalorder %s21, %s24
    %p33 = scmp.eq.s32.totalorder %s16, 1
    %p34 = por %p32, %p33
    %p35 = scmp.ne.s32.totalorder %s24, %s25
    %p36 = scmp.eq.s32.totalorder %s16, 0
    %p37 = por %p35, %p36
    %p38 = scmp.ne.s32.totalorder %s24, %s25
    %p39 = scmp.eq.s32.totalorder %s17, 1
    %p40 = por %p38, %p39
    %p42 = scmp.ne.s32.totalorder %s25, %s41
    %p43 = scmp.eq.s32.totalorder %s17, 0
    %p44 = por %p42, %p43
    %s46 = sadd.s32 %s45, 1
    %p49 = scmp.eq.s32.totalorder %s11, 1
    %p50 = scmp.ne.s32.totalorder %s45, %s47
    %p51 = scmp.eq.s32.totalorder %s11, 0
    %p52 = por %p50, %p51
    %p53 = scmp.ne.s32.totalorder %s45, %s47
    %p54 = scmp.eq.s32.totalorder %s16, 1
    %p55 = por %p53, %p54
    %p56 = scmp.ne.s32.totalorder %s47, %s48
    %p57 = scmp.eq.s32.totalorder %s16, 0
    %p58 = por %p56, %p57
    %p59 = scmp.ne.s32.totalorder %s47, %s48
    %p60 = scmp.eq.s32.totalorder %s17, 1
    %p61 = por %p59, %p60
    %p63 = scmp.ne.s32.totalorder %s48, %s62
    %p64 = scmp.eq.s32.totalorder %s17, 0
    %p65 = por %p63, %p64
    %s67 = sadd.s32 %s66, 1
    %p70 = scmp.eq.s32.totalorder %s11, 1
    %p71 = scmp.ne.s32.totalorder %s66, %s68
    %p72 = scmp.eq.s32.totalorder %s11, 0
    %p73 = por %p71, %p72
    %p74 = scmp.ne.s32.totalorder %s66, %s68
    %p75 = scmp.eq.s32.totalorder %s16, 1
    %p76 = por %p74, %p75
    %p77 = scmp.ne.s32.totalorder %s68, %s69
    %p78 = scmp.eq.s32.totalorder %s16, 0
    %p79 = por %p77, %p78
    %p80 = scmp.ne.s32.totalorder %s68, %s69
    %p81 = scmp.eq.s32.totalorder %s17, 1
    %p82 = por %p80, %p81
    %p84 = scmp.ne.s32.totalorder %s69, %s83
    %p85 = scmp.eq.s32.totalorder %s17, 0
    %p86 = por %p84, %p85
    %s88 = sadd.s32 %s87, 1
    %p91 = scmp.eq.s32.totalorder %s11, 1
    %p92 = scmp.ne.s32.totalorder %s87, %s89
    %p93 = scmp.eq.s32.totalorder %s11, 0
    %p94 = por %p92, %p93
    %p95 = scmp.ne.s32.totalorder %s87, %s89
    %p96 = scmp.eq.s32.totalorder %s16, 1
    %p97 = por %p95, %p96
    %p98 = scmp.ne.s32.totalorder %s89, %s90
    %p99 = scmp.eq.s32.totalorder %s16, 0
    %p100 = por %p98, %p99
    %p101 = scmp.ne.s32.totalorder %s89, %s90
    %p102 = scmp.eq.s32.totalorder %s17, 1
    %p103 = por %p101, %p102
    %p105 = scmp.ne.s32.totalorder %s90, %s104
    %p106 = scmp.eq.s32.totalorder %s17, 0
    %p107 = por %p105, %p106
    %s109 = sadd.s32 %s108, 1
    %p112 = scmp.eq.s32.totalorder %s11, 1
    %p113 = scmp.ne.s32.totalorder %s108, %s110
    %p114 = scmp.eq.s32.totalorder %s11, 0
    %p115 = por %p113, %p114
    %p116 = scmp.ne.s32.totalorder %s108, %s110
    %p117 = scmp.eq.s32.totalorder %s16, 1
    %p118 = por %p116, %p117
    %p119 = scmp.ne.s32.totalorder %s110, %s111
    %p120 = scmp.eq.s32.totalorder %s16, 0
    %p121 = por %p119, %p120
    %p122 = scmp.ne.s32.totalorder %s110, %s111
    %p123 = scmp.eq.s32.totalorder %s17, 1
    %p124 = por %p122, %p123
    %p126 = scmp.ne.s32.totalorder %s111, %s125
    %p127 = scmp.eq.s32.totalorder %s17, 0
    %p128 = por %p126, %p127
    %s129 = ssub.s32 %s11, %s18
    %p130 = scmp.eq.s32.totalorder %s129, 0
    %s132 = sadd.s32 %s131, 1
    %s133 = scalar_select %p130, %s131, %s132
    %p136 = pneg %p130
    %p137 = scmp.eq.s32.totalorder %s11, 1
    %p138 = por %p136, %p137
    %p139 = scmp.ne.s32.totalorder %s131, %s134
    %p140 = scmp.eq.s32.totalorder %s11, 0
    %p141 = por %p139, %p140
    %p142 = scmp.ne.s32.totalorder %s131, %s134
    %p143 = scmp.eq.s32.totalorder %s16, 1
    %p144 = por %p142, %p143
    %p145 = scmp.ne.s32.totalorder %s134, %s135
    %p146 = scmp.eq.s32.totalorder %s16, 0
    %p147 = por %p145, %p146
    %p148 = scmp.ne.s32.totalorder %s134, %s135
    %p149 = scmp.eq.s32.totalorder %s17, 1
    %p150 = por %p148, %p149
    %p152 = scmp.ne.s32.totalorder %s135, %s151
    %p153 = scmp.eq.s32.totalorder %s17, 0
    %p154 = por %p152, %p153
    %p155 = scmp.le.s32.totalorder 1, %s11
    %p156 = scmp.lt.s32.totalorder %s11, 3
    %p157 = pnand %p155, %p156
    %p158 = pneg %p157
    // Predicated region
    $region9: #{diffusion_bert_forward.7} parent=5 // pred_check
      _
    $region10: #{diffusion_bert_forward.7} parent=5 // pred_check_branch
      %160 = sbr.rel (%p157) target = $region12
    $region11: #{diffusion_bert_forward.7} parent=5 // pred_region
      %s161 = ssub.s32 %s11, 1
      // Predicated region
      $region13: #{diffusion_bert_forward.7} parent=11 // pred_check
        %p162 = pneg %p58
      $region14: #{diffusion_bert_forward.7} parent=11 // pred_check_branch
        %164 = sbr.rel (%p162) target = $region16
      $region15: #{diffusion_bert_forward.7} parent=11 // pred_region
        _
      $region16: #{diffusion_bert_forward.7} parent=11 // pred_fallthru
        _
      // Predicated region
      $region17: #{diffusion_bert_forward.7} parent=11 // pred_check
        %p165 = pneg %p79
      $region18: #{diffusion_bert_forward.7} parent=11 // pred_check_branch
        %167 = sbr.rel (%p165) target = $region20
      $region19: #{diffusion_bert_forward.7} parent=11 // pred_region
        _
      $region20: #{diffusion_bert_forward.7} parent=11 // pred_fallthru
        _
      // Predicated region
      $region21: #{diffusion_bert_forward.7} parent=11 // pred_check
        %p168 = pneg %p100
      $region22: #{diffusion_bert_forward.7} parent=11 // pred_check_branch
        %170 = sbr.rel (%p168) target = $region24
      $region23: #{diffusion_bert_forward.7} parent=11 // pred_region
        _
      $region24: #{diffusion_bert_forward.7} parent=11 // pred_fallthru
        _
      // Predicated region
      $region25: #{diffusion_bert_forward.7} parent=11 // pred_check
        %p171 = pneg %p121
      $region26: #{diffusion_bert_forward.7} parent=11 // pred_check_branch
        %173 = sbr.rel (%p171) target = $region28
      $region27: #{diffusion_bert_forward.7} parent=11 // pred_region
        _
      $region28: #{diffusion_bert_forward.7} parent=11 // pred_fallthru
        _
    $region12: #{diffusion_bert_forward.7} parent=5 // pred_fallthru
      _
    %p174 = scmp.lt.s32.totalorder %s11, 2
    // Predicated region
    $region29: #{diffusion_bert_forward.7} parent=5 // pred_check
      %p175 = pneg %p174
    $region30: #{diffusion_bert_forward.7} parent=5 // pred_check_branch
      %177 = sbr.rel (%p175) target = $region32
    $region31: #{diffusion_bert_forward.7} parent=5 // pred_region
      // Predicated region
      $region33: #{diffusion_bert_forward.7} parent=31 // pred_check
        %p178 = pneg %p31
      $region34: #{diffusion_bert_forward.7} parent=31 // pred_check_branch
        %180 = sbr.rel (%p178) target = $region36
      $region35: #{diffusion_bert_forward.7} parent=31 // pred_region
        %p181 = scmp.lt.s32.totalorder %s11, 1
        %s182 = scalar_select %p181, %s11, 1
        %s183 = smul.addr %s182, 8
        %s184 = scalar_lea.vmem %s0, %s183
      $region36: #{diffusion_bert_forward.7} parent=31 // pred_fallthru
        _
    $region32: #{diffusion_bert_forward.7} parent=5 // pred_fallthru
      _
    %p185 = scmp.le.s32.totalorder 1, %s11
    %p186 = scmp.lt.s32.totalorder %s11, 3
    %p187 = pnand %p185, %p186
    %p188 = pneg %p187
    // Predicated region
    $region37: #{diffusion_bert_forward.7} parent=5 // pred_check
      _
    $region38: #{diffusion_bert_forward.7} parent=5 // pred_check_branch
      %190 = sbr.rel (%p187) target = $region40
    $region39: #{diffusion_bert_forward.7} parent=5 // pred_region
      %s191 = ssub.s32 %s11, 1
      %p192 = scmp.lt.s32.totalorder %s16, 1
      %s193 = scalar_select %p192, %s16, 1
      %s194 = smul.addr %s193, 8
      %s195 = scalar_lea.vmem %s0, %s194
      %p196 = pneg %p37
      %p197 = pneg %p34
      %p198 = pneg %p58
      %p199 = pneg %p55
      %p200 = pneg %p79
      %p201 = pneg %p76
      %p202 = pneg %p100
      %p203 = pneg %p97
      %p204 = pneg %p121
      %p205 = pneg %p118
      %p206 = pneg %p147
      %p207 = pneg %p144
      %p208 = scmp.lt.s32.totalorder %s16, 1
      %s209 = scalar_select %p208, %s16, 1
      %s210 = smul.addr %s209, 8
      %s211 = scalar_lea.vmem %s5, %s210
      %p212 = scmp.lt.s32.totalorder %s16, 1
      %s213 = scalar_select %p212, %s16, 1
      %s214 = smul.addr %s213, 8
      %s215 = scalar_lea.vmem %s0, %s214
      %p216 = scmp.lt.s32.totalorder %s16, 1
      %s217 = scalar_select %p216, %s16, 1
      %s218 = smul.addr %s217, 8
      %s219 = scalar_lea.vmem %s5, %s218
      %v220 = vld [vmem:[%s215] sm:$0xff]
      %v221 = vld [vmem:[%s1] sm:$0xff]
      %v222 = vadd.f32 %v220, %v221
      %v223 = vld [vmem:[%s2] sm:$0x1]
      %v225 = vlaneseq
      %v226 = vshrl.u32 %v225, 7
      %v227 = vsub.s32 0, %v226
      %v228 = vrot.slane %v223, %v227
      %v230 = vadd.f32 %v222, %v228
      %v231 = vld [vmem:[%s3] sm:$0x1]
      %v232 = vld [vmem:[%s4] sm:$0x1]
      %vm233 = vcmask 261120
      %v234 = vsel %vm233, %v230, 0.0
      %235 = vadd.xlane.f32.xlu0 %v234
      %v236 = vpop.xlane.xlu0 %235
      %v237 = vrcp.pop 32.0
      %v238 = vmul.f32 %v236, %v237
      %v239 = vsub.f32 %v230, %v238
      %v240 = vmul.f32 %v239, %v239
      %v241 = vsel %vm233, %v240, 0.0
      %242 = vadd.xlane.f32.xlu0 %v241
      %v243 = vpop.xlane.xlu0 %242
      %v244 = vmul.f32 %v243, %v237
      %v245 = vadd.f32 %v244, 1e-12
      %v246 = vrsqrt.pop %v245
      %v247 = vmul.f32 %v239, %v246
      %v249 = vlaneseq
      %v250 = vshrl.u32 %v249, 7
      %v251 = vsub.s32 0, %v250
      %v252 = vrot.slane %v231, %v251
      %v254 = vmul.f32 %v247, %v252
      %v256 = vlaneseq
      %v257 = vshrl.u32 %v256, 7
      %v258 = vsub.s32 0, %v257
      %v259 = vrot.slane %v232, %v258
      %v261 = vadd.f32 %v254, %v259
      %262 = vst.msk [vmem:[%s219] sm:$0xff] %vm233, %v261
      %p263 = scmp.lt.s32.totalorder %s16, 1
      %s264 = scalar_select %p263, %s16, 1
      %s265 = smul.addr %s264, 8
      %s266 = scalar_lea.vmem %s5, %s265
      // Predicated region
      $region41: #{diffusion_bert_forward.7} parent=39 // pred_check
        %p267 = pneg %p144
      $region42: #{diffusion_bert_forward.7} parent=39 // pred_check_branch
        %269 = sbr.rel (%p267) target = $region44
      $region43: #{diffusion_bert_forward.7} parent=39 // pred_region
        _
      $region44: #{diffusion_bert_forward.7} parent=39 // pred_fallthru
        _
    $region40: #{diffusion_bert_forward.7} parent=5 // pred_fallthru
      _
    %p270 = scmp.le.s32.totalorder 2, %s11
    // Predicated region
    $region45: #{diffusion_bert_forward.7} parent=5 // pred_check
      %p271 = pneg %p270
    $region46: #{diffusion_bert_forward.7} parent=5 // pred_check_branch
      %273 = sbr.rel (%p271) target = $region48
    $region47: #{diffusion_bert_forward.7} parent=5 // pred_region
      %s274 = ssub.s32 %s11, 2
      // Predicated region
      $region49: #{diffusion_bert_forward.7} parent=47 // pred_check
        %p275 = pneg %p150
      $region50: #{diffusion_bert_forward.7} parent=47 // pred_check_branch
        %277 = sbr.rel (%p275) target = $region52
      $region51: #{diffusion_bert_forward.7} parent=47 // pred_region
        %p278 = scmp.lt.s32.totalorder %s17, 1
        %s279 = scalar_select %p278, %s17, 1
        %s280 = smul.addr %s279, 8
        %s281 = scalar_lea.vmem %s5, %s280
      $region52: #{diffusion_bert_forward.7} parent=47 // pred_fallthru
        _
    $region48: #{diffusion_bert_forward.7} parent=5 // pred_fallthru
      _
  $region6: #{diffusion_bert_forward.7} parent=0 // loop_footer
    %s15 = sadd.s32 1, %s11
  $region7: #{diffusion_bert_forward.7} parent=0 // loop_footer_branch
    %10 = sbr.rel target = $region3
  $region8: #{diffusion_bert_forward.7} parent=0 // loop_exit
    _

// kernel: diffusion_bert_forward.12
$region0: #{diffusion_bert_forward.12}
  #allocation0 [shape = 'u32[]', space=smem, size = 0x4, offset = 0x4, fixed_abs, tag = 'smem constant byte address 0x4 - core index']
  #allocation1 [shape = 'u32[144,128]{1,0:T(1,128)}', space=vmem, size = 0x12000, scoped, tag = 'internal scratch']
  %s0 = inlined_call_operand.vmem [shape: f32[16,32], index: 0, kind: input, shape index: {}, may-alias: {0,5}]
  %s1 = inlined_call_operand.vmem [shape: bf16[32,32], index: 1, kind: input, shape index: {}]
  %s2 = inlined_call_operand.vmem [shape: f32[1,32], index: 2, kind: input, shape index: {}]
  %s3 = inlined_call_operand.vmem [shape: f32[1,32], index: 3, kind: input, shape index: {}]
  %s4 = inlined_call_operand.vmem [shape: f32[1,32], index: 4, kind: input, shape index: {}]
  %s5 = inlined_call_operand.vmem [shape: f32[16,32], index: 5, kind: output, shape index: {}, may-alias: {0,5}]
  %s6 = sld [smem:[#allocation0]]
  $region30: #{diffusion_bert_forward.12} parent=0
    _
  %s8 = ssub.s32 1, %s6
  %s9 = scalar_select 0, %s8, %s6
  // Predicated region
  $region2: #{diffusion_bert_forward.12} parent=0 // pred_check
    _
  $region3: #{diffusion_bert_forward.12} parent=0 // pred_check_branch
    %11 = sbr.rel (0) target = $region5
  $region4: #{diffusion_bert_forward.12} parent=0 // pred_region
    _
  $region5: #{diffusion_bert_forward.12} parent=0 // pred_fallthru
    _
  // Predicated region
  $region6: #{diffusion_bert_forward.12} parent=0 // pred_check
    _
  $region7: #{diffusion_bert_forward.12} parent=0 // pred_check_branch
    %13 = sbr.rel (0) target = $region9
  $region8: #{diffusion_bert_forward.12} parent=0 // pred_region
    _
  $region9: #{diffusion_bert_forward.12} parent=0 // pred_fallthru
    _
  // Predicated region
  $region10: #{diffusion_bert_forward.12} parent=0 // pred_check
    _
  $region11: #{diffusion_bert_forward.12} parent=0 // pred_check_branch
    %15 = sbr.rel (0) target = $region13
  $region12: #{diffusion_bert_forward.12} parent=0 // pred_region
    _
  $region13: #{diffusion_bert_forward.12} parent=0 // pred_fallthru
    _
  // Predicated region
  $region14: #{diffusion_bert_forward.12} parent=0 // pred_check
    _
  $region15: #{diffusion_bert_forward.12} parent=0 // pred_check_branch
    %17 = sbr.rel (0) target = $region17
  $region16: #{diffusion_bert_forward.12} parent=0 // pred_region
    _
  $region17: #{diffusion_bert_forward.12} parent=0 // pred_fallthru
    _
  // Predicated region
  $region18: #{diffusion_bert_forward.12} parent=0 // pred_check
    _
  $region19: #{diffusion_bert_forward.12} parent=0 // pred_check_branch
    %19 = sbr.rel (0) target = $region21
  $region20: #{diffusion_bert_forward.12} parent=0 // pred_region
    _
  $region21: #{diffusion_bert_forward.12} parent=0 // pred_fallthru
    _
  %v21 = vld [vmem:[%s0] sm:$0xff]
  %v22 = vld [vmem:[%s0 + $0x8] sm:$0xff]
  %v23 = vld [vmem:[%s1] sm:$0xf]
  %v24 = vld [vmem:[%s1 + $0x4] sm:$0xf]
  %v25 = vld [vmem:[%s1 + $0x8] sm:$0xf]
  %v26 = vld [vmem:[%s1 + $0xc] sm:$0xf]
  %v27 = vpack.c.bf16 %v22, %v21
  %v28 = vld [vmem:[%s2] sm:$0x1]
  %v30 = vlaneseq
  %v31 = vshrl.u32 %v30, 7
  %v32 = vsub.s32 0, %v31
  %v33 = vrot.slane %v28, %v32
  %v39 = vunpack.c.l.b16 %v23
  %v40 = vunpack.c.l.b16 %v24
  %v41 = vunpack.c.l.b16 %v25
  %v42 = vunpack.c.l.b16 %v26
  %v43 = vpack.c.b16 %v40, %v39
  %v44 = vpack.c.b16 %v42, %v41
  %vm47 = vcmask 261120
  %v49 = vsel %vm47, %v27, 0
  %51 = vmatprep.subr.bf16.mxu0 0
  %52 = vmatpush1.bf16.msra.mxu0 0
  %53 = vmatprep.subr.bf16.mxu0 0
  %54 = vmatpush1.bf16.msra.mxu0 0
  %55 = vmatprep.subr.bf16.mxu0 0
  %56 = vmatpush1.bf16.msra.mxu0 0
  %57 = vmatprep.subr.bf16.mxu0 0
  %58 = vmatpush1.bf16.msra.mxu0 0
  %59 = vmatprep.subr.bf16.mxu0 0
  %60 = vmatpush1.bf16.msra.mxu0 0
  %61 = vmatprep.subr.bf16.mxu0 0
  %62 = vmatpush1.bf16.msra.mxu0 0
  %63 = vmatprep.subr.bf16.mxu0 0
  %64 = vmatpush1.bf16.msra.mxu0 %v44
  %65 = vmatprep.subr.bf16.mxu0 0
  %66 = vmatpush1.bf16.msra.mxu0 %v43
  %67 = vmatprep.subr.bf16.mxu0 0
  %68 = vmatpush2.bf16.msra.mxu0 0
  %69 = vmatprep.subr.bf16.mxu0 0
  %70 = vmatpush2.bf16.msra.mxu0 0
  %71 = vmatprep.subr.bf16.mxu0 0
  %72 = vmatpush2.bf16.msra.mxu0 0
  %73 = vmatprep.subr.bf16.mxu0 0
  %74 = vmatpush2.bf16.msra.mxu0 0
  %75 = vmatprep.subr.bf16.mxu0 0
  %76 = vmatpush2.bf16.msra.mxu0 0
  %77 = vmatprep.subr.bf16.mxu0 0
  %78 = vmatpush2.bf16.msra.mxu0 0
  %79 = vmatprep.subr.bf16.mxu0 0
  %80 = vmatpush2.bf16.msra.mxu0 0
  %81 = vmatprep.subr.bf16.mxu0 0
  %82 = vmatpush2.bf16.msra.mxu0 0
  %83 = vmatprep.mubr.bf16.mxu0 0
  %84 = vmatmul.mubr.bf16.gmra.mxu0 %v49
  %v85 = vpop.f32.mrf.mxu0
  %v86 = vadd.f32 %v33, %v85
  %v87 = vpop.f32.mrf.mxu0
  %v88 = vpop.f32.mrf.mxu0
  %v89 = vadd.f32 %v33, %v88
  %v90 = vpop.f32.mrf.mxu0
  %91 = vdwg.mxu0
  %v92 = vmul.f32 %v86, %v86
  %v93 = vmul.f32 %v89, %v89
  %v94 = vmul.f32 %v86, %v92
  %v95 = vmul.f32 %v89, %v93
  %v96 = vmul.f32 %v94, 0.044715
  %v97 = vmul.f32 %v95, 0.044715
  %v98 = vadd.f32 %v86, %v96
  %v99 = vadd.f32 %v89, %v97
  %v100 = vmul.f32 %v98, 0.7978846
  %v101 = vmul.f32 %v99, 0.7978846
  %v102 = vtanh.pop %v100
  %v103 = vtanh.pop %v101
  %v104 = vadd.f32 %v102, 1.0
  %v105 = vadd.f32 %v103, 1.0
  %v106 = vmul.f32 %v104, 0.5
  %v107 = vmul.f32 %v105, 0.5
  %v108 = vmul.f32 %v86, %v106
  %v109 = vmul.f32 %v89, %v107
  %v110 = vld [vmem:[%s3] sm:$0x1]
  %v111 = vld [vmem:[%s4] sm:$0x1]
  %v112 = vsel %vm47, %v108, 0.0
  %113 = vadd.xlane.f32.xlu0 %v112
  %v114 = vpop.xlane.xlu0 %113
  %v115 = vsel %vm47, %v109, 0.0
  %116 = vadd.xlane.f32.xlu0 %v115
  %v117 = vpop.xlane.xlu0 %116
  %v118 = vrcp.pop 32.0
  %v119 = vmul.f32 %v114, %v118
  %v120 = vmul.f32 %v117, %v118
  %v121 = vsub.f32 %v108, %v119
  %v122 = vsub.f32 %v109, %v120
  %v123 = vmul.f32 %v121, %v121
  %v124 = vmul.f32 %v122, %v122
  %v125 = vsel %vm47, %v123, 0.0
  %126 = vadd.xlane.f32.xlu0 %v125
  %v127 = vpop.xlane.xlu0 %126
  %v128 = vsel %vm47, %v124, 0.0
  %129 = vadd.xlane.f32.xlu0 %v128
  %v130 = vpop.xlane.xlu0 %129
  %v131 = vmul.f32 %v127, %v118
  %v132 = vmul.f32 %v130, %v118
  %v133 = vadd.f32 %v131, 1e-12
  %v134 = vadd.f32 %v132, 1e-12
  %v135 = vrsqrt.pop %v133
  %v136 = vrsqrt.pop %v134
  %v137 = vmul.f32 %v121, %v135
  %v138 = vmul.f32 %v122, %v136
  %v140 = vlaneseq
  %v141 = vshrl.u32 %v140, 7
  %v142 = vsub.s32 0, %v141
  %v143 = vrot.slane %v110, %v142
  %v145 = vmul.f32 %v137, %v143
  %v146 = vmul.f32 %v138, %v143
  %v148 = vlaneseq
  %v149 = vshrl.u32 %v148, 7
  %v150 = vsub.s32 0, %v149
  %v151 = vrot.slane %v111, %v150
  %v153 = vadd.f32 %v145, %v151
  %v154 = vadd.f32 %v146, %v151
  %155 = vst.msk [vmem:[%s5] sm:$0xff] %vm47, %v153
  %156 = vst.msk [vmem:[%s5 + $0x8] sm:$0xff] %vm47, %v154
  // Predicated region
  $region22: #{diffusion_bert_forward.12} parent=0 // pred_check
    _
  $region23: #{diffusion_bert_forward.12} parent=0 // pred_check_branch
    %158 = sbr.rel (0) target = $region25
  $region24: #{diffusion_bert_forward.12} parent=0 // pred_region
    _
  $region25: #{diffusion_bert_forward.12} parent=0 // pred_fallthru
    _
  // Predicated region
  $region26: #{diffusion_bert_forward.12} parent=0 // pred_check
    _
  $region27: #{diffusion_bert_forward.12} parent=0 // pred_check_branch
    %160 = sbr.rel (0) target = $region29
  $region28: #{diffusion_bert_forward.12} parent=0 // pred_region
    _
  $region29: #{diffusion_bert_forward.12} parent=0 // pred_fallthru
    _

// kernel: diffusion_bert_forward.9
$region0: #{diffusion_bert_forward.9}
  #allocation0 [shape = 'u32[]', space=smem, size = 0x4, offset = 0x4, fixed_abs, tag = 'smem constant byte address 0x4 - core index']
  #allocation1 [shape = 'u32[144,128]{1,0:T(1,128)}', space=vmem, size = 0x12000, scoped, tag = 'internal scratch']
  %s0 = inlined_call_operand.vmem [shape: f32[16,32], index: 0, kind: input, shape index: {}, may-alias: {0,7}]
  %s1 = inlined_call_operand.vmem [shape: bf16[32,64], index: 1, kind: input, shape index: {}]
  %s2 = inlined_call_operand.vmem [shape: f32[1,64], index: 2, kind: input, shape index: {}]
  %s3 = inlined_call_operand.vmem [shape: bf16[64,32], index: 3, kind: input, shape index: {}]
  %s4 = inlined_call_operand.vmem [shape: f32[1,32], index: 4, kind: input, shape index: {}]
  %s5 = inlined_call_operand.vmem [shape: f32[1,32], index: 5, kind: input, shape index: {}]
  %s6 = inlined_call_operand.vmem [shape: f32[1,32], index: 6, kind: input, shape index: {}]
  %s7 = inlined_call_operand.vmem [shape: f32[16,32], index: 7, kind: output, shape index: {}, may-alias: {0,7}]
  %s8 = sld [smem:[#allocation0]]
  $region38: #{diffusion_bert_forward.9} parent=0
    _
  %s10 = ssub.s32 1, %s8
  %s11 = scalar_select 0, %s10, %s8
  // Predicated region
  $region2: #{diffusion_bert_forward.9} parent=0 // pred_check
    _
  $region3: #{diffusion_bert_forward.9} parent=0 // pred_check_branch
    %13 = sbr.rel (0) target = $region5
  $region4: #{diffusion_bert_forward.9} parent=0 // pred_region
    _
  $region5: #{diffusion_bert_forward.9} parent=0 // pred_fallthru
    _
  // Predicated region
  $region6: #{diffusion_bert_forward.9} parent=0 // pred_check
    _
  $region7: #{diffusion_bert_forward.9} parent=0 // pred_check_branch
    %15 = sbr.rel (0) target = $region9
  $region8: #{diffusion_bert_forward.9} parent=0 // pred_region
    _
  $region9: #{diffusion_bert_forward.9} parent=0 // pred_fallthru
    _
  // Predicated region
  $region10: #{diffusion_bert_forward.9} parent=0 // pred_check
    _
  $region11: #{diffusion_bert_forward.9} parent=0 // pred_check_branch
    %17 = sbr.rel (0) target = $region13
  $region12: #{diffusion_bert_forward.9} parent=0 // pred_region
    _
  $region13: #{diffusion_bert_forward.9} parent=0 // pred_fallthru
    _
  // Predicated region
  $region14: #{diffusion_bert_forward.9} parent=0 // pred_check
    _
  $region15: #{diffusion_bert_forward.9} parent=0 // pred_check_branch
    %19 = sbr.rel (0) target = $region17
  $region16: #{diffusion_bert_forward.9} parent=0 // pred_region
    _
  $region17: #{diffusion_bert_forward.9} parent=0 // pred_fallthru
    _
  // Predicated region
  $region18: #{diffusion_bert_forward.9} parent=0 // pred_check
    _
  $region19: #{diffusion_bert_forward.9} parent=0 // pred_check_branch
    %21 = sbr.rel (0) target = $region21
  $region20: #{diffusion_bert_forward.9} parent=0 // pred_region
    _
  $region21: #{diffusion_bert_forward.9} parent=0 // pred_fallthru
    _
  // Predicated region
  $region22: #{diffusion_bert_forward.9} parent=0 // pred_check
    _
  $region23: #{diffusion_bert_forward.9} parent=0 // pred_check_branch
    %23 = sbr.rel (0) target = $region25
  $region24: #{diffusion_bert_forward.9} parent=0 // pred_region
    _
  $region25: #{diffusion_bert_forward.9} parent=0 // pred_fallthru
    _
  // Predicated region
  $region26: #{diffusion_bert_forward.9} parent=0 // pred_check
    _
  $region27: #{diffusion_bert_forward.9} parent=0 // pred_check_branch
    %25 = sbr.rel (0) target = $region29
  $region28: #{diffusion_bert_forward.9} parent=0 // pred_region
    _
  $region29: #{diffusion_bert_forward.9} parent=0 // pred_fallthru
    _
  %v27 = vld [vmem:[%s0] sm:$0xff]
  %v28 = vld [vmem:[%s0 + $0x8] sm:$0xff]
  %v29 = vld [vmem:[%s1] sm:$0xf]
  %v30 = vld [vmem:[%s1 + $0x4] sm:$0xf]
  %v31 = vld [vmem:[%s1 + $0x8] sm:$0xf]
  %v32 = vld [vmem:[%s1 + $0xc] sm:$0xf]
  %v33 = vpack.c.bf16 %v28, %v27
  %v34 = vld [vmem:[%s2] sm:$0x1]
  %v36 = vlaneseq
  %v37 = vshrl.u32 %v36, 7
  %v38 = vsub.s32 0, %v37
  %v39 = vrot.slane %v34, %v38
  %v45 = vunpack.c.l.b16 %v29
  %v46 = vunpack.c.l.b16 %v30
  %v47 = vunpack.c.l.b16 %v31
  %v48 = vunpack.c.l.b16 %v32
  %v49 = vpack.c.b16 %v46, %v45
  %v50 = vpack.c.b16 %v48, %v47
  %vm53 = vcmask 261120
  %v55 = vsel %vm53, %v33, 0
  %57 = vmatprep.subr.bf16.mxu0 0
  %58 = vmatpush1.bf16.msra.mxu0 0
  %59 = vmatprep.subr.bf16.mxu0 0
  %60 = vmatpush1.bf16.msra.mxu0 0
  %61 = vmatprep.subr.bf16.mxu0 0
  %62 = vmatpush1.bf16.msra.mxu0 0
  %63 = vmatprep.subr.bf16.mxu0 0
  %64 = vmatpush1.bf16.msra.mxu0 0
  %65 = vmatprep.subr.bf16.mxu0 0
  %66 = vmatpush1.bf16.msra.mxu0 0
  %67 = vmatprep.subr.bf16.mxu0 0
  %68 = vmatpush1.bf16.msra.mxu0 0
  %69 = vmatprep.subr.bf16.mxu0 0
  %70 = vmatpush1.bf16.msra.mxu0 %v50
  %71 = vmatprep.subr.bf16.mxu0 0
  %72 = vmatpush1.bf16.msra.mxu0 %v49
  %73 = vmatprep.subr.bf16.mxu0 0
  %74 = vmatpush2.bf16.msra.mxu0 0
  %75 = vmatprep.subr.bf16.mxu0 0
  %76 = vmatpush2.bf16.msra.mxu0 0
  %77 = vmatprep.subr.bf16.mxu0 0
  %78 = vmatpush2.bf16.msra.mxu0 0
  %79 = vmatprep.subr.bf16.mxu0 0
  %80 = vmatpush2.bf16.msra.mxu0 0
  %81 = vmatprep.subr.bf16.mxu0 0
  %82 = vmatpush2.bf16.msra.mxu0 0
  %83 = vmatprep.subr.bf16.mxu0 0
  %84 = vmatpush2.bf16.msra.mxu0 0
  %85 = vmatprep.subr.bf16.mxu0 0
  %86 = vmatpush2.bf16.msra.mxu0 0
  %87 = vmatprep.subr.bf16.mxu0 0
  %88 = vmatpush2.bf16.msra.mxu0 0
  %89 = vmatprep.mubr.bf16.mxu0 0
  %90 = vmatmul.mubr.bf16.gmra.mxu0 %v55
  %v91 = vpop.f32.mrf.mxu0
  %v92 = vadd.f32 %v39, %v91
  %v93 = vpop.f32.mrf.mxu0
  %v94 = vpop.f32.mrf.mxu0
  %v95 = vadd.f32 %v39, %v94
  %v96 = vpop.f32.mrf.mxu0
  %97 = vdwg.mxu0
  %v98 = vmul.f32 %v92, %v92
  %v99 = vmul.f32 %v95, %v95
  %v100 = vmul.f32 %v92, %v98
  %v101 = vmul.f32 %v95, %v99
  %v102 = vmul.f32 %v100, 0.044715
  %v103 = vmul.f32 %v101, 0.044715
  %v104 = vadd.f32 %v92, %v102
  %v105 = vadd.f32 %v95, %v103
  %v106 = vmul.f32 %v104, 0.7978846
  %v107 = vmul.f32 %v105, 0.7978846
  %v108 = vtanh.pop %v106
  %v109 = vtanh.pop %v107
  %v110 = vadd.f32 %v108, 1.0
  %v111 = vadd.f32 %v109, 1.0
  %v112 = vmul.f32 %v110, 0.5
  %v113 = vmul.f32 %v111, 0.5
  %v114 = vmul.f32 %v92, %v112
  %v115 = vmul.f32 %v95, %v113
  %v116 = vld [vmem:[%s3] sm:$0xf]
  %v117 = vld [vmem:[%s3 + $0x4] sm:$0xf]
  %v118 = vld [vmem:[%s3 + $0x8] sm:$0xf]
  %v119 = vld [vmem:[%s3 + $0xc] sm:$0xf]
  %v120 = vld [vmem:[%s3 + $0x10] sm:$0xf]
  %v121 = vld [vmem:[%s3 + $0x14] sm:$0xf]
  %v122 = vld [vmem:[%s3 + $0x18] sm:$0xf]
  %v123 = vld [vmem:[%s3 + $0x1c] sm:$0xf]
  %v124 = vpack.c.bf16 %v115, %v114
  %v125 = vld [vmem:[%s4] sm:$0x1]
  %v127 = vlaneseq
  %v128 = vshrl.u32 %v127, 7
  %v129 = vsub.s32 0, %v128
  %v130 = vrot.slane %v125, %v129
  %v140 = vunpack.c.l.b16 %v116
  %v141 = vunpack.c.l.b16 %v117
  %v142 = vunpack.c.l.b16 %v118
  %v143 = vunpack.c.l.b16 %v119
  %v144 = vunpack.c.l.b16 %v120
  %v145 = vunpack.c.l.b16 %v121
  %v146 = vunpack.c.l.b16 %v122
  %v147 = vunpack.c.l.b16 %v123
  %v148 = vpack.c.b16 %v141, %v140
  %v149 = vpack.c.b16 %v143, %v142
  %v150 = vpack.c.b16 %v145, %v144
  %v151 = vpack.c.b16 %v147, %v146
  %vm156 = vcmask 523264
  %v158 = vsel %vm156, %v124, 0
  %160 = vmatprep.subr.bf16.mxu0 0
  %161 = vmatpush1.bf16.msra.mxu0 0
  %162 = vmatprep.subr.bf16.mxu0 0
  %163 = vmatpush1.bf16.msra.mxu0 0
  %164 = vmatprep.subr.bf16.mxu0 0
  %165 = vmatpush1.bf16.msra.mxu0 0
  %166 = vmatprep.subr.bf16.mxu0 0
  %167 = vmatpush1.bf16.msra.mxu0 0
  %168 = vmatprep.subr.bf16.mxu0 0
  %169 = vmatpush1.bf16.msra.mxu0 %v151
  %170 = vmatprep.subr.bf16.mxu0 0
  %171 = vmatpush1.bf16.msra.mxu0 %v150
  %172 = vmatprep.subr.bf16.mxu0 0
  %173 = vmatpush1.bf16.msra.mxu0 %v149
  %174 = vmatprep.subr.bf16.mxu0 0
  %175 = vmatpush1.bf16.msra.mxu0 %v148
  %176 = vmatprep.subr.bf16.mxu0 0
  %177 = vmatpush2.bf16.msra.mxu0 0
  %178 = vmatprep.subr.bf16.mxu0 0
  %179 = vmatpush2.bf16.msra.mxu0 0
  %180 = vmatprep.subr.bf16.mxu0 0
  %181 = vmatpush2.bf16.msra.mxu0 0
  %182 = vmatprep.subr.bf16.mxu0 0
  %183 = vmatpush2.bf16.msra.mxu0 0
  %184 = vmatprep.subr.bf16.mxu0 0
  %185 = vmatpush2.bf16.msra.mxu0 0
  %186 = vmatprep.subr.bf16.mxu0 0
  %187 = vmatpush2.bf16.msra.mxu0 0
  %188 = vmatprep.subr.bf16.mxu0 0
  %189 = vmatpush2.bf16.msra.mxu0 0
  %190 = vmatprep.subr.bf16.mxu0 0
  %191 = vmatpush2.bf16.msra.mxu0 0
  %192 = vmatprep.mubr.bf16.mxu0 0
  %193 = vmatmul.mubr.bf16.gmra.mxu0 %v158
  %v194 = vpop.f32.mrf.mxu0
  %v195 = vadd.f32 %v130, %v194
  %v196 = vpop.f32.mrf.mxu0
  %v197 = vpop.f32.mrf.mxu0
  %v198 = vadd.f32 %v130, %v197
  %v199 = vpop.f32.mrf.mxu0
  %200 = vdwg.mxu0
  %v201 = vadd.f32 %v195, %v27
  %v202 = vadd.f32 %v198, %v28
  %v203 = vld [vmem:[%s5] sm:$0x1]
  %v204 = vld [vmem:[%s6] sm:$0x1]
  %v205 = vsel %vm53, %v201, 0.0
  %206 = vadd.xlane.f32.xlu0 %v205
  %v207 = vpop.xlane.xlu0 %206
  %v208 = vsel %vm53, %v202, 0.0
  %209 = vadd.xlane.f32.xlu0 %v208
  %v210 = vpop.xlane.xlu0 %209
  %v211 = vrcp.pop 32.0
  %v212 = vmul.f32 %v207, %v211
  %v213 = vmul.f32 %v210, %v211
  %v214 = vsub.f32 %v201, %v212
  %v215 = vsub.f32 %v202, %v213
  %v216 = vmul.f32 %v214, %v214
  %v217 = vmul.f32 %v215, %v215
  %v218 = vsel %vm53, %v216, 0.0
  %219 = vadd.xlane.f32.xlu0 %v218
  %v220 = vpop.xlane.xlu0 %219
  %v221 = vsel %vm53, %v217, 0.0
  %222 = vadd.xlane.f32.xlu0 %v221
  %v223 = vpop.xlane.xlu0 %222
  %v224 = vmul.f32 %v220, %v211
  %v225 = vmul.f32 %v223, %v211
  %v226 = vadd.f32 %v224, 1e-12
  %v227 = vadd.f32 %v225, 1e-12
  %v228 = vrsqrt.pop %v226
  %v229 = vrsqrt.pop %v227
  %v230 = vmul.f32 %v214, %v228
  %v231 = vmul.f32 %v215, %v229
  %v233 = vlaneseq
  %v234 = vshrl.u32 %v233, 7
  %v235 = vsub.s32 0, %v234
  %v236 = vrot.slane %v203, %v235
  %v238 = vmul.f32 %v230, %v236
  %v239 = vmul.f32 %v231, %v236
  %v241 = vlaneseq
  %v242 = vshrl.u32 %v241, 7
  %v243 = vsub.s32 0, %v242
  %v244 = vrot.slane %v204, %v243
  %v246 = vadd.f32 %v238, %v244
  %v247 = vadd.f32 %v239, %v244
  %248 = vst.msk [vmem:[%s7] sm:$0xff] %vm53, %v246
  %249 = vst.msk [vmem:[%s7 + $0x8] sm:$0xff] %vm53, %v247
  // Predicated region
  $region30: #{diffusion_bert_forward.9} parent=0 // pred_check
    _
  $region31: #{diffusion_bert_forward.9} parent=0 // pred_check_branch
    %251 = sbr.rel (0) target = $region33
  $region32: #{diffusion_bert_forward.9} parent=0 // pred_region
    _
  $region33: #{diffusion_bert_forward.9} parent=0 // pred_fallthru
    _
  // Predicated region
  $region34: #{diffusion_bert_forward.9} parent=0 // pred_check
    _
  $region35: #{diffusion_bert_forward.9} parent=0 // pred_check_branch
    %253 = sbr.rel (0) target = $region37
  $region36: #{diffusion_bert_forward.9} parent=0 // pred_region
    _
  $region37: #{diffusion_bert_forward.9} parent=0 // pred_fallthru
    _

// kernel: diffusion_bert_forward.8
$region0: #{diffusion_bert_forward.8}
  #allocation0 [shape = 'u32[]', space=smem, size = 0x4, offset = 0x4, fixed_abs, tag = 'smem constant byte address 0x4 - core index']
  #allocation1 [shape = 'u32[144,128]{1,0:T(1,128)}', space=vmem, size = 0x12000, scoped, tag = 'internal scratch']
  %s0 = inlined_call_operand.vmem [shape: f32[2,8,32], index: 0, kind: input, shape index: {}, may-alias: {0,7}]
  %s1 = inlined_call_operand.vmem [shape: bf16[32,96], index: 1, kind: input, shape index: {}]
  %s2 = inlined_call_operand.vmem [shape: f32[1,96], index: 2, kind: input, shape index: {}]
  %s3 = inlined_call_operand.vmem [shape: bf16[32,32], index: 3, kind: input, shape index: {}]
  %s4 = inlined_call_operand.vmem [shape: f32[1,32], index: 4, kind: input, shape index: {}]
  %s5 = inlined_call_operand.vmem [shape: f32[1,32], index: 5, kind: input, shape index: {}]
  %s6 = inlined_call_operand.vmem [shape: f32[1,32], index: 6, kind: input, shape index: {}]
  %s7 = inlined_call_operand.vmem [shape: f32[2,8,32], index: 7, kind: output, shape index: {}, may-alias: {0,7}]
  %s8 = sld [smem:[#allocation0]]
  $region61: #{diffusion_bert_forward.8} parent=0
    _
  %s10 = ssub.s32 1, %s8
  %s11 = scalar_select 0, %s10, %s8
  loop: start=0, step=1, limit=4
  $region2: #{diffusion_bert_forward.8} parent=0 // loop_pre_header
    _
  $region3: #{diffusion_bert_forward.8} parent=0 // loop_header
    %s13 = sphi 0, %s17
    %p14 = scmp.ge.s32.totalorder %s13, 4
    %s23 = sphi 0, %s25
    %s26 = sphi 0, %s23
    %s27 = sphi 0, %s26
    %s43 = sphi 0, %s27
    %s47 = sphi 0, %s47
    %s49 = sphi 0, %s47
    %s50 = sphi 0, %s49
    %s64 = sphi 0, %s50
    %s68 = sphi 0, %s68
    %s70 = sphi 0, %s68
    %s71 = sphi 0, %s70
    %s85 = sphi 0, %s71
    %s89 = sphi 0, %s89
    %s91 = sphi 0, %s89
    %s92 = sphi 0, %s91
    %s106 = sphi 0, %s92
    %s110 = sphi 0, %s110
    %s112 = sphi 0, %s110
    %s113 = sphi 0, %s112
    %s127 = sphi 0, %s113
    %s131 = sphi 0, %s131
    %s133 = sphi 0, %s131
    %s134 = sphi 0, %s133
    %s148 = sphi 0, %s134
    %s152 = sphi 0, %s152
    %s154 = sphi 0, %s152
    %s155 = sphi 0, %s154
    %s169 = sphi 0, %s155
    %s175 = sphi 0, %s177
    %s178 = sphi 0, %s175
    %s179 = sphi 0, %s178
    %s195 = sphi 0, %s179
  $region4: #{diffusion_bert_forward.8} parent=0 // loop_header_branch
    %16 = sbr.rel (%p14) target = $region8
  $region5: #{diffusion_bert_forward.8} parent=0 // loop_body
    %s18 = ssub.s32 %s13, 1
    %s19 = ssub.s32 %s13, 2
    %s20 = sadd.s32 %s13, 1
    %s21 = ssub.s32 %s13, %s20
    %p22 = scmp.eq.s32.totalorder %s21, 0
    %s24 = sadd.s32 %s23, 1
    %s25 = scalar_select %p22, %s23, %s24
    %p28 = pneg %p22
    %p29 = scmp.eq.s32.totalorder %s13, 1
    %p30 = por %p28, %p29
    %p31 = scmp.ne.s32.totalorder %s23, %s26
    %p32 = scmp.eq.s32.totalorder %s13, 0
    %p33 = por %p31, %p32
    %p34 = scmp.ne.s32.totalorder %s23, %s26
    %p35 = scmp.eq.s32.totalorder %s18, 1
    %p36 = por %p34, %p35
    %p37 = scmp.ne.s32.totalorder %s26, %s27
    %p38 = scmp.eq.s32.totalorder %s18, 0
    %p39 = por %p37, %p38
    %p40 = scmp.ne.s32.totalorder %s26, %s27
    %p41 = scmp.eq.s32.totalorder %s19, 1
    %p42 = por %p40, %p41
    %p44 = scmp.ne.s32.totalorder %s27, %s43
    %p45 = scmp.eq.s32.totalorder %s19, 0
    %p46 = por %p44, %p45
    %s48 = sadd.s32 %s47, 1
    %p51 = scmp.eq.s32.totalorder %s13, 1
    %p52 = scmp.ne.s32.totalorder %s47, %s49
    %p53 = scmp.eq.s32.totalorder %s13, 0
    %p54 = por %p52, %p53
    %p55 = scmp.ne.s32.totalorder %s47, %s49
    %p56 = scmp.eq.s32.totalorder %s18, 1
    %p57 = por %p55, %p56
    %p58 = scmp.ne.s32.totalorder %s49, %s50
    %p59 = scmp.eq.s32.totalorder %s18, 0
    %p60 = por %p58, %p59
    %p61 = scmp.ne.s32.totalorder %s49, %s50
    %p62 = scmp.eq.s32.totalorder %s19, 1
    %p63 = por %p61, %p62
    %p65 = scmp.ne.s32.totalorder %s50, %s64
    %p66 = scmp.eq.s32.totalorder %s19, 0
    %p67 = por %p65, %p66
    %s69 = sadd.s32 %s68, 1
    %p72 = scmp.eq.s32.totalorder %s13, 1
    %p73 = scmp.ne.s32.totalorder %s68, %s70
    %p74 = scmp.eq.s32.totalorder %s13, 0
    %p75 = por %p73, %p74
    %p76 = scmp.ne.s32.totalorder %s68, %s70
    %p77 = scmp.eq.s32.totalorder %s18, 1
    %p78 = por %p76, %p77
    %p79 = scmp.ne.s32.totalorder %s70, %s71
    %p80 = scmp.eq.s32.totalorder %s18, 0
    %p81 = por %p79, %p80
    %p82 = scmp.ne.s32.totalorder %s70, %s71
    %p83 = scmp.eq.s32.totalorder %s19, 1
    %p84 = por %p82, %p83
    %p86 = scmp.ne.s32.totalorder %s71, %s85
    %p87 = scmp.eq.s32.totalorder %s19, 0
    %p88 = por %p86, %p87
    %s90 = sadd.s32 %s89, 1
    %p93 = scmp.eq.s32.totalorder %s13, 1
    %p94 = scmp.ne.s32.totalorder %s89, %s91
    %p95 = scmp.eq.s32.totalorder %s13, 0
    %p96 = por %p94, %p95
    %p97 = scmp.ne.s32.totalorder %s89, %s91
    %p98 = scmp.eq.s32.totalorder %s18, 1
    %p99 = por %p97, %p98
    %p100 = scmp.ne.s32.totalorder %s91, %s92
    %p101 = scmp.eq.s32.totalorder %s18, 0
    %p102 = por %p100, %p101
    %p103 = scmp.ne.s32.totalorder %s91, %s92
    %p104 = scmp.eq.s32.totalorder %s19, 1
    %p105 = por %p103, %p104
    %p107 = scmp.ne.s32.totalorder %s92, %s106
    %p108 = scmp.eq.s32.totalorder %s19, 0
    %p109 = por %p107, %p108
    %s111 = sadd.s32 %s110, 1
    %p114 = scmp.eq.s32.totalorder %s13, 1
    %p115 = scmp.ne.s32.totalorder %s110, %s112
    %p116 = scmp.eq.s32.totalorder %s13, 0
    %p117 = por %p115, %p116
    %p118 = scmp.ne.s32.totalorder %s110, %s112
    %p119 = scmp.eq.s32.totalorder %s18, 1
    %p120 = por %p118, %p119
    %p121 = scmp.ne.s32.totalorder %s112, %s113
    %p122 = scmp.eq.s32.totalorder %s18, 0
    %p123 = por %p121, %p122
    %p124 = scmp.ne.s32.totalorder %s112, %s113
    %p125 = scmp.eq.s32.totalorder %s19, 1
    %p126 = por %p124, %p125
    %p128 = scmp.ne.s32.totalorder %s113, %s127
    %p129 = scmp.eq.s32.totalorder %s19, 0
    %p130 = por %p128, %p129
    %s132 = sadd.s32 %s131, 1
    %p135 = scmp.eq.s32.totalorder %s13, 1
    %p136 = scmp.ne.s32.totalorder %s131, %s133
    %p137 = scmp.eq.s32.totalorder %s13, 0
    %p138 = por %p136, %p137
    %p139 = scmp.ne.s32.totalorder %s131, %s133
    %p140 = scmp.eq.s32.totalorder %s18, 1
    %p141 = por %p139, %p140
    %p142 = scmp.ne.s32.totalorder %s133, %s134
    %p143 = scmp.eq.s32.totalorder %s18, 0
    %p144 = por %p142, %p143
    %p145 = scmp.ne.s32.totalorder %s133, %s134
    %p146 = scmp.eq.s32.totalorder %s19, 1
    %p147 = por %p145, %p146
    %p149 = scmp.ne.s32.totalorder %s134, %s148
    %p150 = scmp.eq.s32.totalorder %s19, 0
    %p151 = por %p149, %p150
    %s153 = sadd.s32 %s152, 1
    %p156 = scmp.eq.s32.totalorder %s13, 1
    %p157 = scmp.ne.s32.totalorder %s152, %s154
    %p158 = scmp.eq.s32.totalorder %s13, 0
    %p159 = por %p157, %p158
    %p160 = scmp.ne.s32.totalorder %s152, %s154
    %p161 = scmp.eq.s32.totalorder %s18, 1
    %p162 = por %p160, %p161
    %p163 = scmp.ne.s32.totalorder %s154, %s155
    %p164 = scmp.eq.s32.totalorder %s18, 0
    %p165 = por %p163, %p164
    %p166 = scmp.ne.s32.totalorder %s154, %s155
    %p167 = scmp.eq.s32.totalorder %s19, 1
    %p168 = por %p166, %p167
    %p170 = scmp.ne.s32.totalorder %s155, %s169
    %p171 = scmp.eq.s32.totalorder %s19, 0
    %p172 = por %p170, %p171
    %s173 = ssub.s32 %s13, %s20
    %p174 = scmp.eq.s32.totalorder %s173, 0
    %s176 = sadd.s32 %s175, 1
    %s177 = scalar_select %p174, %s175, %s176
    %p180 = pneg %p174
    %p181 = scmp.eq.s32.totalorder %s13, 1
    %p182 = por %p180, %p181
    %p183 = scmp.ne.s32.totalorder %s175, %s178
    %p184 = scmp.eq.s32.totalorder %s13, 0
    %p185 = por %p183, %p184
    %p186 = scmp.ne.s32.totalorder %s175, %s178
    %p187 = scmp.eq.s32.totalorder %s18, 1
    %p188 = por %p186, %p187
    %p189 = scmp.ne.s32.totalorder %s178, %s179
    %p190 = scmp.eq.s32.totalorder %s18, 0
    %p191 = por %p189, %p190
    %p192 = scmp.ne.s32.totalorder %s178, %s179
    %p193 = scmp.eq.s32.totalorder %s19, 1
    %p194 = por %p192, %p193
    %p196 = scmp.ne.s32.totalorder %s179, %s195
    %p197 = scmp.eq.s32.totalorder %s19, 0
    %p198 = por %p196, %p197
    %p199 = scmp.le.s32.totalorder 1, %s13
    %p200 = scmp.lt.s32.totalorder %s13, 3
    %p201 = pnand %p199, %p200
    %p202 = pneg %p201
    // Predicated region
    $region9: #{diffusion_bert_forward.8} parent=5 // pred_check
      _
    $region10: #{diffusion_bert_forward.8} parent=5 // pred_check_branch
      %204 = sbr.rel (%p201) target = $region12
    $region11: #{diffusion_bert_forward.8} parent=5 // pred_region
      %s205 = ssub.s32 %s13, 1
      // Predicated region
      $region13: #{diffusion_bert_forward.8} parent=11 // pred_check
        %p206 = pneg %p60
      $region14: #{diffusion_bert_forward.8} parent=11 // pred_check_branch
        %208 = sbr.rel (%p206) target = $region16
      $region15: #{diffusion_bert_forward.8} parent=11 // pred_region
        _
      $region16: #{diffusion_bert_forward.8} parent=11 // pred_fallthru
        _
      // Predicated region
      $region17: #{diffusion_bert_forward.8} parent=11 // pred_check
        %p209 = pneg %p81
      $region18: #{diffusion_bert_forward.8} parent=11 // pred_check_branch
        %211 = sbr.rel (%p209) target = $region20
      $region19: #{diffusion_bert_forward.8} parent=11 // pred_region
        _
      $region20: #{diffusion_bert_forward.8} parent=11 // pred_fallthru
        _
      // Predicated region
      $region21: #{diffusion_bert_forward.8} parent=11 // pred_check
        %p212 = pneg %p102
      $region22: #{diffusion_bert_forward.8} parent=11 // pred_check_branch
        %214 = sbr.rel (%p212) target = $region24
      $region23: #{diffusion_bert_forward.8} parent=11 // pred_region
        _
      $region24: #{diffusion_bert_forward.8} parent=11 // pred_fallthru
        _
      // Predicated region
      $region25: #{diffusion_bert_forward.8} parent=11 // pred_check
        %p215 = pneg %p123
      $region26: #{diffusion_bert_forward.8} parent=11 // pred_check_branch
        %217 = sbr.rel (%p215) target = $region28
      $region27: #{diffusion_bert_forward.8} parent=11 // pred_region
        _
      $region28: #{diffusion_bert_forward.8} parent=11 // pred_fallthru
        _
      // Predicated region
      $region29: #{diffusion_bert_forward.8} parent=11 // pred_check
        %p218 = pneg %p144
      $region30: #{diffusion_bert_forward.8} parent=11 // pred_check_branch
        %220 = sbr.rel (%p218) target = $region32
      $region31: #{diffusion_bert_forward.8} parent=11 // pred_region
        _
      $region32: #{diffusion_bert_forward.8} parent=11 // pred_fallthru
        _
      // Predicated region
      $region33: #{diffusion_bert_forward.8} parent=11 // pred_check
        %p221 = pneg %p165
      $region34: #{diffusion_bert_forward.8} parent=11 // pred_check_branch
        %223 = sbr.rel (%p221) target = $region36
      $region35: #{diffusion_bert_forward.8} parent=11 // pred_region
        _
      $region36: #{diffusion_bert_forward.8} parent=11 // pred_fallthru
        _
    $region12: #{diffusion_bert_forward.8} parent=5 // pred_fallthru
      _
    %p224 = scmp.lt.s32.totalorder %s13, 2
    // Predicated region
    $region37: #{diffusion_bert_forward.8} parent=5 // pred_check
      %p225 = pneg %p224
    $region38: #{diffusion_bert_forward.8} parent=5 // pred_check_branch
      %227 = sbr.rel (%p225) target = $region40
    $region39: #{diffusion_bert_forward.8} parent=5 // pred_region
      // Predicated region
      $region41: #{diffusion_bert_forward.8} parent=39 // pred_check
        %p228 = pneg %p33
      $region42: #{diffusion_bert_forward.8} parent=39 // pred_check_branch
        %230 = sbr.rel (%p228) target = $region44
      $region43: #{diffusion_bert_forward.8} parent=39 // pred_region
        %p231 = scmp.lt.s32.totalorder %s13, 1
        %s232 = scalar_select %p231, %s13, 1
        %s233 = smul.addr %s232, 8
        %s234 = scalar_lea.vmem %s0, %s233
      $region44: #{diffusion_bert_forward.8} parent=39 // pred_fallthru
        _
    $region40: #{diffusion_bert_forward.8} parent=5 // pred_fallthru
      _
    %p235 = scmp.le.s32.totalorder 1, %s13
    %p236 = scmp.lt.s32.totalorder %s13, 3
    %p237 = pnand %p235, %p236
    %p238 = pneg %p237
    // Predicated region
    $region45: #{diffusion_bert_forward.8} parent=5 // pred_check
      _
    $region46: #{diffusion_bert_forward.8} parent=5 // pred_check_branch
      %240 = sbr.rel (%p237) target = $region48
    $region47: #{diffusion_bert_forward.8} parent=5 // pred_region
      %s241 = ssub.s32 %s13, 1
      %p242 = scmp.lt.s32.totalorder %s18, 1
      %s243 = scalar_select %p242, %s18, 1
      %s244 = smul.addr %s243, 8
      %s245 = scalar_lea.vmem %s0, %s244
      %p246 = pneg %p39
      %p247 = pneg %p36
      %p248 = pneg %p60
      %p249 = pneg %p57
      %p250 = pneg %p81
      %p251 = pneg %p78
      %p252 = pneg %p102
      %p253 = pneg %p99
      %p254 = pneg %p123
      %p255 = pneg %p120
      %p256 = pneg %p144
      %p257 = pneg %p141
      %p258 = pneg %p165
      %p259 = pneg %p162
      %p260 = pneg %p191
      %p261 = pneg %p188
      %p262 = scmp.lt.s32.totalorder %s18, 1
      %s263 = scalar_select %p262, %s18, 1
      %s264 = smul.addr %s263, 8
      %s265 = scalar_lea.vmem %s7, %s264
      %p266 = scmp.lt.s32.totalorder %s18, 1
      %s267 = scalar_select %p266, %s18, 1
      %s268 = smul.addr %s267, 8
      %s269 = scalar_lea.vmem %s0, %s268
      %p270 = scmp.lt.s32.totalorder %s18, 1
      %s271 = scalar_select %p270, %s18, 1
      %s272 = smul.addr %s271, 8
      %s273 = scalar_lea.vmem %s7, %s272
      %v275 = vld [vmem:[%s269] sm:$0xff]
      %v276 = vld [vmem:[%s1] sm:$0xf]
      %v277 = vld [vmem:[%s1 + $0x4] sm:$0xf]
      %v278 = vld [vmem:[%s1 + $0x8] sm:$0xf]
      %v279 = vld [vmem:[%s1 + $0xc] sm:$0xf]
      %v280 = vpack.c.bf16 %v275, %v275
      %v281 = vld [vmem:[%s2] sm:$0x1]
      %v283 = vlaneseq
      %v284 = vshrl.u32 %v283, 7
      %v285 = vsub.s32 0, %v284
      %v286 = vrot.slane %v281, %v285
      %v292 = vunpack.c.l.b16 %v276
      %v293 = vunpack.c.l.b16 %v277
      %v294 = vunpack.c.l.b16 %v278
      %v295 = vunpack.c.l.b16 %v279
      %v296 = vpack.c.b16 %v293, %v292
      %v297 = vpack.c.b16 %v295, %v294
      %vm300 = vcmask 261120
      %v302 = vsel %vm300, %v280, 0
      %304 = vmatprep.subr.bf16.mxu0 0
      %305 = vmatpush1.bf16.msra.mxu0 0
      %306 = vmatprep.subr.bf16.mxu0 0
      %307 = vmatpush1.bf16.msra.mxu0 0
      %308 = vmatprep.subr.bf16.mxu0 0
      %309 = vmatpush1.bf16.msra.mxu0 0
      %310 = vmatprep.subr.bf16.mxu0 0
      %311 = vmatpush1.bf16.msra.mxu0 0
      %312 = vmatprep.subr.bf16.mxu0 0
      %313 = vmatpush1.bf16.msra.mxu0 0
      %314 = vmatprep.subr.bf16.mxu0 0
      %315 = vmatpush1.bf16.msra.mxu0 0
      %316 = vmatprep.subr.bf16.mxu0 0
      %317 = vmatpush1.bf16.msra.mxu0 %v297
      %318 = vmatprep.subr.bf16.mxu0 0
      %319 = vmatpush1.bf16.msra.mxu0 %v296
      %320 = vmatprep.subr.bf16.mxu0 0
      %321 = vmatpush2.bf16.msra.mxu0 0
      %322 = vmatprep.subr.bf16.mxu0 0
      %323 = vmatpush2.bf16.msra.mxu0 0
      %324 = vmatprep.subr.bf16.mxu0 0
      %325 = vmatpush2.bf16.msra.mxu0 0
      %326 = vmatprep.subr.bf16.mxu0 0
      %327 = vmatpush2.bf16.msra.mxu0 0
      %328 = vmatprep.subr.bf16.mxu0 0
      %329 = vmatpush2.bf16.msra.mxu0 0
      %330 = vmatprep.subr.bf16.mxu0 0
      %331 = vmatpush2.bf16.msra.mxu0 0
      %332 = vmatprep.subr.bf16.mxu0 0
      %333 = vmatpush2.bf16.msra.mxu0 0
      %334 = vmatprep.subr.bf16.mxu0 0
      %335 = vmatpush2.bf16.msra.mxu0 0
      %336 = vmatprep.mubr.bf16.mxu0 0
      %337 = vmatmul.mubr.bf16.gmra.mxu0 %v302
      %v338 = vpop.f32.mrf.mxu0
      %v339 = vadd.f32 %v286, %v338
      %v340 = vpop.f32.mrf.mxu0
      %v341 = vpop.f32.mrf.mxu0
      %v342 = vpop.f32.mrf.mxu0
      %343 = vdwg.mxu0
      %v344 = vmul.f32 %v339, 0.25
      %v345 = vpack.c.bf16 %v344, %v344
      %v346 = vpack.c.bf16 %v339, %v339
      %348 = vrot.lane.b32.xlu0 %v346, 96
      %v349 = vpop.permute.xlu0 %348
      %vm350 = vcmask 130048
      %v352 = vsel %vm350, %v345, 0
      %v355 = vsel %vm350, %v349, 0
      %357 = vmatprep.subr.bf16.mxu0 0
      %358 = vmatpush1.bf16.xpose.msra.mxu0 0
      %359 = vmatprep.subr.bf16.mxu0 0
      %360 = vmatpush1.bf16.xpose.msra.mxu0 0
      %361 = vmatprep.subr.bf16.mxu0 0
      %362 = vmatpush1.bf16.xpose.msra.mxu0 0
      %363 = vmatprep.subr.bf16.mxu0 0
      %364 = vmatpush1.bf16.xpose.msra.mxu0 0
      %365 = vmatprep.subr.bf16.mxu0 0
      %366 = vmatpush1.bf16.xpose.msra.mxu0 0
      %367 = vmatprep.subr.bf16.mxu0 0
      %368 = vmatpush1.bf16.xpose.msra.mxu0 0
      %369 = vmatprep.subr.bf16.mxu0 0
      %370 = vmatpush1.bf16.xpose.msra.mxu0 0
      %371 = vmatprep.subr.bf16.mxu0 0
      %372 = vmatpush1.bf16.xpose.msra.mxu0 %v355
      %373 = vmatprep.subr.bf16.mxu0 0
      %374 = vmatpush2.bf16.xpose.msra.mxu0 0
      %375 = vmatprep.subr.bf16.mxu0 0
      %376 = vmatpush2.bf16.xpose.msra.mxu0 0
      %377 = vmatprep.subr.bf16.mxu0 0
      %378 = vmatpush2.bf16.xpose.msra.mxu0 0
      %379 = vmatprep.subr.bf16.mxu0 0
      %380 = vmatpush2.bf16.xpose.msra.mxu0 0
      %381 = vmatprep.subr.bf16.mxu0 0
      %382 = vmatpush2.bf16.xpose.msra.mxu0 0
      %383 = vmatprep.subr.bf16.mxu0 0
      %384 = vmatpush2.bf16.xpose.msra.mxu0 0
      %385 = vmatprep.subr.bf16.mxu0 0
      %386 = vmatpush2.bf16.xpose.msra.mxu0 0
      %387 = vmatprep.subr.bf16.mxu0 0
      %388 = vmatpush2.bf16.xpose.msra.mxu0 0
      %389 = vmatprep.mubr.bf16.mxu0 0
      %390 = vmatmul.mubr.bf16.gmra.mxu0 %v352
      %v391 = vpop.f32.mrf.mxu0
      %v392 = vadd.f32 0.0, %v391
      %v393 = vpop.f32.mrf.mxu0
      %v394 = vpop.f32.mrf.mxu0
      %v395 = vpop.f32.mrf.mxu0
      %396 = vdwg.mxu0
      %vm397 = vcmask 64512
      %v398 = vsel %vm397, %v392, -inf
      %399 = vmax.xlane.f32.xlu0 %v398
      %v400 = vpop.xlane.xlu0 %399
      %v401 = vsub.f32 %v392, %v400
      %v402 = vmul.f32 %v401, 1.442695
      %v403 = vpow.pop %v402
      %v404 = vsel %vm397, %v403, 0.0
      %405 = vadd.xlane.f32.xlu0 %v404
      %v406 = vpop.xlane.xlu0 %405
      %v407 = vrcp.pop %v406
      %v408 = vpack.c.bf16 %v403, %v403
      %409 = vrot.lane.b32.xlu0 %v346, 64
      %v410 = vpop.permute.xlu0 %409
      %v412 = vsel %vm397, %v408, 0
      %vm414 = vcmask 1043456
      %v416 = vsel %vm414, %v410, 0
      %418 = vmatprep.subr.bf16.mxu0 0
      %419 = vmatpush1.bf16.msra.mxu0 0
      %420 = vmatprep.subr.bf16.mxu0 0
      %421 = vmatpush1.bf16.msra.mxu0 0
      %422 = vmatprep.subr.bf16.mxu0 0
      %423 = vmatpush1.bf16.msra.mxu0 0
      %424 = vmatprep.subr.bf16.mxu0 0
      %425 = vmatpush1.bf16.msra.mxu0 0
      %426 = vmatprep.subr.bf16.mxu0 0
      %427 = vmatpush1.bf16.msra.mxu0 0
      %428 = vmatprep.subr.bf16.mxu0 0
      %429 = vmatpush1.bf16.msra.mxu0 0
      %430 = vmatprep.subr.bf16.mxu0 0
      %431 = vmatpush1.bf16.msra.mxu0 0
      %432 = vmatprep.subr.bf16.mxu0 0
      %433 = vmatpush1.bf16.msra.mxu0 %v416
      %434 = vmatprep.subr.bf16.mxu0 0
      %435 = vmatpush2.bf16.msra.mxu0 0
      %436 = vmatprep.subr.bf16.mxu0 0
      %437 = vmatpush2.bf16.msra.mxu0 0
      %438 = vmatprep.subr.bf16.mxu0 0
      %439 = vmatpush2.bf16.msra.mxu0 0
      %440 = vmatprep.subr.bf16.mxu0 0
      %441 = vmatpush2.bf16.msra.mxu0 0
      %442 = vmatprep.subr.bf16.mxu0 0
      %443 = vmatpush2.bf16.msra.mxu0 0
      %444 = vmatprep.subr.bf16.mxu0 0
      %445 = vmatpush2.bf16.msra.mxu0 0
      %446 = vmatprep.subr.bf16.mxu0 0
      %447 = vmatpush2.bf16.msra.mxu0 0
      %448 = vmatprep.subr.bf16.mxu0 0
      %449 = vmatpush2.bf16.msra.mxu0 0
      %450 = vmatprep.mubr.bf16.mxu0 0
      %451 = vmatmul.mubr.bf16.gmra.mxu0 %v412
      %v452 = vpop.f32.mrf.mxu0
      %v453 = vadd.f32 0.0, %v452
      %v454 = vpop.f32.mrf.mxu0
      %v455 = vpop.f32.mrf.mxu0
      %v456 = vpop.f32.mrf.mxu0
      %457 = vdwg.mxu0
      %v458 = vmul.f32 %v453, %v407
      %460 = vrot.lane.b32.xlu0 %v345, 112
      %v461 = vpop.permute.xlu0 %460
      %462 = vrot.lane.b32.xlu0 %v346, 80
      %v463 = vpop.permute.xlu0 %462
      %v465 = vsel %vm350, %v461, 0
      %v468 = vsel %vm350, %v463, 0
      %470 = vmatprep.subr.bf16.mxu0 0
      %471 = vmatpush1.bf16.xpose.msra.mxu0 0
      %472 = vmatprep.subr.bf16.mxu0 0
      %473 = vmatpush1.bf16.xpose.msra.mxu0 0
      %474 = vmatprep.subr.bf16.mxu0 0
      %475 = vmatpush1.bf16.xpose.msra.mxu0 0
      %476 = vmatprep.subr.bf16.mxu0 0
      %477 = vmatpush1.bf16.xpose.msra.mxu0 0
      %478 = vmatprep.subr.bf16.mxu0 0
      %479 = vmatpush1.bf16.xpose.msra.mxu0 0
      %480 = vmatprep.subr.bf16.mxu0 0
      %481 = vmatpush1.bf16.xpose.msra.mxu0 0
      %482 = vmatprep.subr.bf16.mxu0 0
      %483 = vmatpush1.bf16.xpose.msra.mxu0 0
      %484 = vmatprep.subr.bf16.mxu0 0
      %485 = vmatpush1.bf16.xpose.msra.mxu0 %v468
      %486 = vmatprep.subr.bf16.mxu0 0
      %487 = vmatpush2.bf16.xpose.msra.mxu0 0
      %488 = vmatprep.subr.bf16.mxu0 0
      %489 = vmatpush2.bf16.xpose.msra.mxu0 0
      %490 = vmatprep.subr.bf16.mxu0 0
      %491 = vmatpush2.bf16.xpose.msra.mxu0 0
      %492 = vmatprep.subr.bf16.mxu0 0
      %493 = vmatpush2.bf16.xpose.msra.mxu0 0
      %494 = vmatprep.subr.bf16.mxu0 0
      %495 = vmatpush2.bf16.xpose.msra.mxu0 0
      %496 = vmatprep.subr.bf16.mxu0 0
      %497 = vmatpush2.bf16.xpose.msra.mxu0 0
      %498 = vmatprep.subr.bf16.mxu0 0
      %499 = vmatpush2.bf16.xpose.msra.mxu0 0
      %500 = vmatprep.subr.bf16.mxu0 0
      %501 = vmatpush2.bf16.xpose.msra.mxu0 0
      %502 = vmatprep.mubr.bf16.mxu0 0
      %503 = vmatmul.mubr.bf16.gmra.mxu0 %v465
      %v504 = vpop.f32.mrf.mxu0
      %v505 = vadd.f32 0.0, %v504
      %v506 = vpop.f32.mrf.mxu0
      %v507 = vpop.f32.mrf.mxu0
      %v508 = vpop.f32.mrf.mxu0
      %509 = vdwg.mxu0
      %v510 = vsel %vm397, %v505, -inf
      %511 = vmax.xlane.f32.xlu0 %v510
      %v512 = vpop.xlane.xlu0 %511
      %v513 = vsub.f32 %v505, %v512
      %v514 = vmul.f32 %v513, 1.442695
      %v515 = vpow.pop %v514
      %v516 = vsel %vm397, %v515, 0.0
      %517 = vadd.xlane.f32.xlu0 %v516
      %v518 = vpop.xlane.xlu0 %517
      %v519 = vrcp.pop %v518
      %v520 = vpack.c.bf16 %v515, %v515
      %521 = vrot.lane.b32.xlu0 %v346, 48
      %v522 = vpop.permute.xlu0 %521
      %v524 = vsel %vm397, %v520, 0
      %v527 = vsel %vm414, %v522, 0
      %529 = vmatprep.subr.bf16.mxu0 0
      %530 = vmatpush1.bf16.msra.mxu0 0
      %531 = vmatprep.subr.bf16.mxu0 0
      %532 = vmatpush1.bf16.msra.mxu0 0
      %533 = vmatprep.subr.bf16.mxu0 0
      %534 = vmatpush1.bf16.msra.mxu0 0
      %535 = vmatprep.subr.bf16.mxu0 0
      %536 = vmatpush1.bf16.msra.mxu0 0
      %537 = vmatprep.subr.bf16.mxu0 0
      %538 = vmatpush1.bf16.msra.mxu0 0
      %539 = vmatprep.subr.bf16.mxu0 0
      %540 = vmatpush1.bf16.msra.mxu0 0
      %541 = vmatprep.subr.bf16.mxu0 0
      %542 = vmatpush1.bf16.msra.mxu0 0
      %543 = vmatprep.subr.bf16.mxu0 0
      %544 = vmatpush1.bf16.msra.mxu0 %v527
      %545 = vmatprep.subr.bf16.mxu0 0
      %546 = vmatpush2.bf16.msra.mxu0 0
      %547 = vmatprep.subr.bf16.mxu0 0
      %548 = vmatpush2.bf16.msra.mxu0 0
      %549 = vmatprep.subr.bf16.mxu0 0
      %550 = vmatpush2.bf16.msra.mxu0 0
      %551 = vmatprep.subr.bf16.mxu0 0
      %552 = vmatpush2.bf16.msra.mxu0 0
      %553 = vmatprep.subr.bf16.mxu0 0
      %554 = vmatpush2.bf16.msra.mxu0 0
      %555 = vmatprep.subr.bf16.mxu0 0
      %556 = vmatpush2.bf16.msra.mxu0 0
      %557 = vmatprep.subr.bf16.mxu0 0
      %558 = vmatpush2.bf16.msra.mxu0 0
      %559 = vmatprep.subr.bf16.mxu0 0
      %560 = vmatpush2.bf16.msra.mxu0 0
      %561 = vmatprep.mubr.bf16.mxu0 0
      %562 = vmatmul.mubr.bf16.gmra.mxu0 %v524
      %v563 = vpop.f32.mrf.mxu0
      %v564 = vadd.f32 0.0, %v563
      %v565 = vpop.f32.mrf.mxu0
      %v566 = vpop.f32.mrf.mxu0
      %v567 = vpop.f32.mrf.mxu0
      %568 = vdwg.mxu0
      %v569 = vmul.f32 %v564, %v519
      %571 = vrot.lane.b32.xlu0 %v569, 16
      %v572 = vpop.permute.xlu0 %571
      %v574 = vsel %vm350, %v458, %v572
      %v575 = vld [vmem:[%s3] sm:$0xf]
      %v576 = vld [vmem:[%s3 + $0x4] sm:$0xf]
      %v577 = vld [vmem:[%s3 + $0x8] sm:$0xf]
      %v578 = vld [vmem:[%s3 + $0xc] sm:$0xf]
      %v579 = vpack.c.bf16 %v574, %v574
      %v580 = vld [vmem:[%s4] sm:$0x1]
      %v582 = vlaneseq
      %v583 = vshrl.u32 %v582, 7
      %v584 = vsub.s32 0, %v583
      %v585 = vrot.slane %v580, %v584
      %v591 = vunpack.c.l.b16 %v575
      %v592 = vunpack.c.l.b16 %v576
      %v593 = vunpack.c.l.b16 %v577
      %v594 = vunpack.c.l.b16 %v578
      %v595 = vpack.c.b16 %v592, %v591
      %v596 = vpack.c.b16 %v594, %v593
      %v600 = vsel %vm300, %v579, 0
      %602 = vmatprep.subr.bf16.mxu0 0
      %603 = vmatpush1.bf16.msra.mxu0 0
      %604 = vmatprep.subr.bf16.mxu0 0
      %605 = vmatpush1.bf16.msra.mxu0 0
      %606 = vmatprep.subr.bf16.mxu0 0
      %607 = vmatpush1.bf16.msra.mxu0 0
      %608 = vmatprep.subr.bf16.mxu0 0
      %609 = vmatpush1.bf16.msra.mxu0 0
      %610 = vmatprep.subr.bf16.mxu0 0
      %611 = vmatpush1.bf16.msra.mxu0 0
      %612 = vmatprep.subr.bf16.mxu0 0
      %613 = vmatpush1.bf16.msra.mxu0 0
      %614 = vmatprep.subr.bf16.mxu0 0
      %615 = vmatpush1.bf16.msra.mxu0 %v596
      %616 = vmatprep.subr.bf16.mxu0 0
      %617 = vmatpush1.bf16.msra.mxu0 %v595
      %618 = vmatprep.subr.bf16.mxu0 0
      %619 = vmatpush2.bf16.msra.mxu0 0
      %620 = vmatprep.subr.bf16.mxu0 0
      %621 = vmatpush2.bf16.msra.mxu0 0
      %622 = vmatprep.subr.bf16.mxu0 0
      %623 = vmatpush2.bf16.msra.mxu0 0
      %624 = vmatprep.subr.bf16.mxu0 0
      %625 = vmatpush2.bf16.msra.mxu0 0
      %626 = vmatprep.subr.bf16.mxu0 0
      %627 = vmatpush2.bf16.msra.mxu0 0
      %628 = vmatprep.subr.bf16.mxu0 0
      %629 = vmatpush2.bf16.msra.mxu0 0
      %630 = vmatprep.subr.bf16.mxu0 0
      %631 = vmatpush2.bf16.msra.mxu0 0
      %632 = vmatprep.subr.bf16.mxu0 0
      %633 = vmatpush2.bf16.msra.mxu0 0
      %634 = vmatprep.mubr.bf16.mxu0 0
      %635 = vmatmul.mubr.bf16.gmra.mxu0 %v600
      %v636 = vpop.f32.mrf.mxu0
      %v637 = vadd.f32 %v585, %v636
      %v638 = vpop.f32.mrf.mxu0
      %v639 = vpop.f32.mrf.mxu0
      %v640 = vpop.f32.mrf.mxu0
      %641 = vdwg.mxu0
      %v642 = vadd.f32 %v637, %v275
      %v643 = vld [vmem:[%s5] sm:$0x1]
      %v644 = vld [vmem:[%s6] sm:$0x1]
      %v645 = vsel %vm300, %v642, 0.0
      %646 = vadd.xlane.f32.xlu0 %v645
      %v647 = vpop.xlane.xlu0 %646
      %v648 = vrcp.pop 32.0
      %v649 = vmul.f32 %v647, %v648
      %v650 = vsub.f32 %v642, %v649
      %v651 = vmul.f32 %v650, %v650
      %v652 = vsel %vm300, %v651, 0.0
      %653 = vadd.xlane.f32.xlu0 %v652
      %v654 = vpop.xlane.xlu0 %653
      %v655 = vmul.f32 %v654, %v648
      %v656 = vadd.f32 %v655, 1e-12
      %v657 = vrsqrt.pop %v656
      %v658 = vmul.f32 %v650, %v657
      %v660 = vlaneseq
      %v661 = vshrl.u32 %v660, 7
      %v662 = vsub.s32 0, %v661
      %v663 = vrot.slane %v643, %v662
      %v665 = vmul.f32 %v658, %v663
      %v667 = vlaneseq
      %v668 = vshrl.u32 %v667, 7
      %v669 = vsub.s32 0, %v668
      %v670 = vrot.slane %v644, %v669
      %v672 = vadd.f32 %v665, %v670
      %673 = vst.msk [vmem:[%s273] sm:$0xff] %vm300, %v672
      %p674 = scmp.lt.s32.totalorder %s18, 1
      %s675 = scalar_select %p674, %s18, 1
      %s676 = smul.addr %s675, 8
      %s677 = scalar_lea.vmem %s7, %s676
      // Predicated region
      $region49: #{diffusion_bert_forward.8} parent=47 // pred_check
        %p678 = pneg %p188
      $region50: #{diffusion_bert_forward.8} parent=47 // pred_check_branch
        %680 = sbr.rel (%p678) target = $region52
      $region51: #{diffusion_bert_forward.8} parent=47 // pred_region
        _
      $region52: #{diffusion_bert_forward.8} parent=47 // pred_fallthru
        _
    $region48: #{diffusion_bert_forward.8} parent=5 // pred_fallthru
      _
    %p681 = scmp.le.s32.totalorder 2, %s13
    // Predicated region
    $region53: #{diffusion_bert_forward.8} parent=5 // pred_check
      %p682 = pneg %p681
    $region54: #{diffusion_bert_forward.8} parent=5 // pred_check_branch
      %684 = sbr.rel (%p682) target = $region56
    $region55: #{diffusion_bert_forward.8} parent=5 // pred_region
      %s685 = ssub.s32 %s13, 2
      // Predicated region
      $region57: #{diffusion_bert_forward.8} parent=55 // pred_check
        %p686 = pneg %p194
      $region58: #{diffusion_bert_forward.8} parent=55 // pred_check_branch
        %688 = sbr.rel (%p686) target = $region60
      $region59: #{diffusion_bert_forward.8} parent=55 // pred_region
        %p689 = scmp.lt.s32.totalorder %s19, 1
        %s690 = scalar_select %p689, %s19, 1
        %s691 = smul.addr %s690, 8
        %s692 = scalar_lea.vmem %s7, %s691
      $region60: #{diffusion_bert_forward.8} parent=55 // pred_fallthru
        _
    $region56: #{diffusion_bert_forward.8} parent=5 // pred_fallthru
      _
  $region6: #{diffusion_bert_forward.8} parent=0 // loop_footer
    %s17 = sadd.s32 1, %s13
  $region7: #{diffusion_bert_forward.8} parent=0 // loop_footer_branch
    %12 = sbr.rel target = $region3
  $region8: #{diffusion_bert_forward.8} parent=0 // loop_exit
    _

// kernel: diffusion_bert_forward.13
$region0: #{diffusion_bert_forward.13}
  #allocation0 [shape = 'u32[]', space=smem, size = 0x4, offset = 0x4, fixed_abs, tag = 'smem constant byte address 0x4 - core index']
  #allocation1 [shape = 'u32[144,128]{1,0:T(1,128)}', space=vmem, size = 0x12000, scoped, tag = 'internal scratch']
  %s0 = inlined_call_operand.vmem [shape: f32[16,32], index: 0, kind: input, shape index: {}]
  %s1 = inlined_call_operand.vmem [shape: bf16[128,32], index: 1, kind: input, shape index: {}]
  %s2 = inlined_call_operand.vmem [shape: f32[1,128], index: 2, kind: input, shape index: {}]
  %s3 = inlined_call_operand.hbm [shape: f32[16,128], index: 3, kind: output, shape index: {}]
  %s4 = sld [smem:[#allocation0]]
  $region22: #{diffusion_bert_forward.13} parent=0
    _
  %s6 = ssub.s32 1, %s4
  %s7 = scalar_select 0, %s6, %s4
  $region1: #{diffusion_bert_forward.13} parent=0
    #allocation2 [shape = 'u8[8192]{0}', space=vmem, size = 0x2000, scoped, tag = 'output window, operand 0, single buffered']
    #allocation3 [shape = 's32[1]{0}', space=sflag, size = 0x4, scoped, tag = 'scoped memory for diffusion_bert_forward.13']
    %8 = vsyncpa [#allocation3], 0
    // Predicated region
    $region2: #{diffusion_bert_forward.13} parent=1 // pred_check
      _
    $region3: #{diffusion_bert_forward.13} parent=1 // pred_check_branch
      %10 = sbr.rel (0) target = $region5
    $region4: #{diffusion_bert_forward.13} parent=1 // pred_region
      _
    $region5: #{diffusion_bert_forward.13} parent=1 // pred_fallthru
      _
    // Predicated region
    $region6: #{diffusion_bert_forward.13} parent=1 // pred_check
      _
    $region7: #{diffusion_bert_forward.13} parent=1 // pred_check_branch
      %12 = sbr.rel (0) target = $region9
    $region8: #{diffusion_bert_forward.13} parent=1 // pred_region
      _
    $region9: #{diffusion_bert_forward.13} parent=1 // pred_fallthru
      _
    // Predicated region
    $region10: #{diffusion_bert_forward.13} parent=1 // pred_check
      _
    $region11: #{diffusion_bert_forward.13} parent=1 // pred_check_branch
      %14 = sbr.rel (0) target = $region13
    $region12: #{diffusion_bert_forward.13} parent=1 // pred_region
      _
    $region13: #{diffusion_bert_forward.13} parent=1 // pred_fallthru
      _
    %v16 = vld [vmem:[%s0] sm:$0xff]
    %v17 = vld [vmem:[%s0 + $0x8] sm:$0xff]
    %v18 = vpack.c.bf16 %v17, %v16
    %v19 = vld [vmem:[%s1] sm:$0xf]
    %v20 = vld [vmem:[%s1 + $0x4] sm:$0xf]
    %v21 = vld [vmem:[%s1 + $0x8] sm:$0xf]
    %v22 = vld [vmem:[%s1 + $0xc] sm:$0xf]
    %v23 = vld [vmem:[%s1 + $0x10] sm:$0xf]
    %v24 = vld [vmem:[%s1 + $0x14] sm:$0xf]
    %v25 = vld [vmem:[%s1 + $0x18] sm:$0xf]
    %v26 = vld [vmem:[%s1 + $0x1c] sm:$0xf]
    %v27 = vld [vmem:[%s1 + $0x20] sm:$0xf]
    %v28 = vld [vmem:[%s1 + $0x24] sm:$0xf]
    %v29 = vld [vmem:[%s1 + $0x28] sm:$0xf]
    %v30 = vld [vmem:[%s1 + $0x2c] sm:$0xf]
    %v31 = vld [vmem:[%s1 + $0x30] sm:$0xf]
    %v32 = vld [vmem:[%s1 + $0x34] sm:$0xf]
    %v33 = vld [vmem:[%s1 + $0x38] sm:$0xf]
    %v34 = vld [vmem:[%s1 + $0x3c] sm:$0xf]
    %v35 = vld [vmem:[%s2] sm:$0x1]
    %v37 = vlaneseq
    %v38 = vshrl.u32 %v37, 7
    %v39 = vsub.s32 0, %v38
    %v40 = vrot.slane %v35, %v39
    %v58 = vunpack.c.l.b16 %v19
    %v59 = vunpack.c.l.b16 %v20
    %v60 = vunpack.c.l.b16 %v21
    %v61 = vunpack.c.l.b16 %v22
    %v62 = vunpack.c.l.b16 %v23
    %v63 = vunpack.c.l.b16 %v24
    %v64 = vunpack.c.l.b16 %v25
    %v65 = vunpack.c.l.b16 %v26
    %v66 = vunpack.c.l.b16 %v27
    %v67 = vunpack.c.l.b16 %v28
    %v68 = vunpack.c.l.b16 %v29
    %v69 = vunpack.c.l.b16 %v30
    %v70 = vunpack.c.l.b16 %v31
    %v71 = vunpack.c.l.b16 %v32
    %v72 = vunpack.c.l.b16 %v33
    %v73 = vunpack.c.l.b16 %v34
    %v74 = vpack.c.b16 %v59, %v58
    %v75 = vpack.c.b16 %v61, %v60
    %v76 = vpack.c.b16 %v63, %v62
    %v77 = vpack.c.b16 %v65, %v64
    %v78 = vpack.c.b16 %v67, %v66
    %v79 = vpack.c.b16 %v69, %v68
    %v80 = vpack.c.b16 %v71, %v70
    %v81 = vpack.c.b16 %v73, %v72
    %vm82 = vcmask 261120
    %v84 = vsel %vm82, %v18, 0
    %v87 = vsel %vm82, %v74, 0
    %v90 = vsel %vm82, %v75, 0
    %v93 = vsel %vm82, %v76, 0
    %v96 = vsel %vm82, %v77, 0
    %v99 = vsel %vm82, %v78, 0
    %v102 = vsel %vm82, %v79, 0
    %v105 = vsel %vm82, %v80, 0
    %v108 = vsel %vm82, %v81, 0
    %110 = vmatprep.subr.bf16.mxu0 0
    %111 = vmatpush1.bf16.xpose.msra.mxu0 %v108
    %112 = vmatprep.subr.bf16.mxu0 0
    %113 = vmatpush1.bf16.xpose.msra.mxu0 %v105
    %114 = vmatprep.subr.bf16.mxu0 0
    %115 = vmatpush1.bf16.xpose.msra.mxu0 %v102
    %116 = vmatprep.subr.bf16.mxu0 0
    %117 = vmatpush1.bf16.xpose.msra.mxu0 %v99
    %118 = vmatprep.subr.bf16.mxu0 0
    %119 = vmatpush1.bf16.xpose.msra.mxu0 %v96
    %120 = vmatprep.subr.bf16.mxu0 0
    %121 = vmatpush1.bf16.xpose.msra.mxu0 %v93
    %122 = vmatprep.subr.bf16.mxu0 0
    %123 = vmatpush1.bf16.xpose.msra.mxu0 %v90
    %124 = vmatprep.subr.bf16.mxu0 0
    %125 = vmatpush1.bf16.xpose.msra.mxu0 %v87
    %126 = vmatprep.subr.bf16.mxu0 0
    %127 = vmatpush2.bf16.xpose.msra.mxu0 0
    %128 = vmatprep.subr.bf16.mxu0 0
    %129 = vmatpush2.bf16.xpose.msra.mxu0 0
    %130 = vmatprep.subr.bf16.mxu0 0
    %131 = vmatpush2.bf16.xpose.msra.mxu0 0
    %132 = vmatprep.subr.bf16.mxu0 0
    %133 = vmatpush2.bf16.xpose.msra.mxu0 0
    %134 = vmatprep.subr.bf16.mxu0 0
    %135 = vmatpush2.bf16.xpose.msra.mxu0 0
    %136 = vmatprep.subr.bf16.mxu0 0
    %137 = vmatpush2.bf16.xpose.msra.mxu0 0
    %138 = vmatprep.subr.bf16.mxu0 0
    %139 = vmatpush2.bf16.xpose.msra.mxu0 0
    %140 = vmatprep.subr.bf16.mxu0 0
    %141 = vmatpush2.bf16.xpose.msra.mxu0 0
    %142 = vmatprep.mubr.bf16.mxu0 0
    %143 = vmatmul.mubr.bf16.gmra.mxu0 %v84
    %v144 = vpop.f32.mrf.mxu0
    %v145 = vadd.f32 %v40, %v144
    %v146 = vpop.f32.mrf.mxu0
    %v147 = vpop.f32.mrf.mxu0
    %v148 = vadd.f32 %v40, %v147
    %v149 = vpop.f32.mrf.mxu0
    %150 = vdwg.mxu0
    %151 = vmax.xlane.f32.xlu0 %v145
    %v152 = vpop.xlane.xlu0 %151
    %153 = vmax.xlane.f32.xlu0 %v148
    %v154 = vpop.xlane.xlu0 %153
    %v155 = vsub.f32 %v145, %v152
    %v156 = vsub.f32 %v148, %v154
    %v157 = vmul.f32 %v155, 1.442695
    %v158 = vpow.pop %v157
    %v159 = vmul.f32 %v156, 1.442695
    %v160 = vpow.pop %v159
    %161 = vadd.xlane.f32.xlu0 %v158
    %v162 = vpop.xlane.xlu0 %161
    %163 = vadd.xlane.f32.xlu0 %v160
    %v164 = vpop.xlane.xlu0 %163
    %v165 = vrcp.pop %v162
    %v166 = vmul.f32 %v158, %v165
    %v167 = vrcp.pop %v164
    %v168 = vmul.f32 %v160, %v167
    %169 = vst [vmem:[#allocation2] sm:$0xff] %v166
    %170 = vst [vmem:[#allocation2 + $0x8] sm:$0xff] %v168
    // Predicated region
    $region14: #{diffusion_bert_forward.13} parent=1 // pred_check
      _
    $region15: #{diffusion_bert_forward.13} parent=1 // pred_check_branch
      %172 = sbr.rel (0) target = $region17
    $region16: #{diffusion_bert_forward.13} parent=1 // pred_region
      %s174 = ssub.s32 256, 256
      %175 = vsyncadd [#allocation3], %s174
      %s176 = sshll.u32 [#allocation2], 4
      %s177 = int_to_ptr.vmem [resolvable:$true] %s176
      %182 = dma.vmem_to_hbm [thread:$0]  %s177, 256, %s3, [#allocation3], 128, 128, 8
    $region17: #{diffusion_bert_forward.13} parent=1 // pred_fallthru
      _
    // Predicated region
    $region18: #{diffusion_bert_forward.13} parent=1 // pred_check
      _
    $region19: #{diffusion_bert_forward.13} parent=1 // pred_check_branch
      %184 = sbr.rel (0) target = $region21
    $region20: #{diffusion_bert_forward.13} parent=1 // pred_region
      %185 = dma.done [#allocation3], 256
    $region21: #{diffusion_bert_forward.13} parent=1 // pred_fallthru
      _
    %186 = vsyncpa [#allocation3], 1

</llo_original>
